<compile_context>
chip_gen: v7x
topology: tpu7x:2x2x1
jax: 0.10.0
libtpu: 0.0.40
codegen_flags: <defaults>
</compile_context>

<pallas_src>
import jax
import jax.numpy as jnp
from jax.experimental import pallas as pl
from jax.experimental.pallas import tpu as pltpu


D_IN, D_H1, D_H2, D_OUT = 784, 548, 252, 10
D_OUT_PAD = 128          # lane-dense padded output width
MAX_TILE_B = 256         # batch-tile cap (good MXU fill, tiny VMEM footprint)
NEG_INF = -1e30          # bias on pad logit columns -> excluded from softmax


def fcnet_kernel(x_ref,
                 w1_ref, b1_ref,
                 w2_ref, b2_ref,
                 w3_ref, b3_ref,
                 out_ref):
    # fc1 (+ folded bn1) + relu.  dropout p=0.5: identity in eval mode.
    h = jnp.dot(x_ref[...], w1_ref[...],
                preferred_element_type=jnp.float32) + b1_ref[...]
    h = jnp.maximum(h, 0.0).astype(jnp.bfloat16)

    # fc2 (+ folded bn2) + relu.  dropout p=0.2: identity in eval mode.
    h = jnp.dot(h, w2_ref[...],
                preferred_element_type=jnp.float32) + b2_ref[...]
    h = jnp.maximum(h, 0.0).astype(jnp.bfloat16)

    # fc3 (padded to 128 lanes; pad columns carry a -1e30 bias) + log_softmax.
    logits = jnp.dot(h, w3_ref[...],
                     preferred_element_type=jnp.float32) + b3_ref[...]
    m = jnp.max(logits, axis=-1, keepdims=True)
    z = logits - m
    lse = jnp.log(jnp.sum(jnp.exp(z), axis=-1, keepdims=True))
    out_ref[...] = z - lse


def _tile_and_pad(b):
    """Pick a sublane-aligned batch tile and the padded batch size."""
    pb = ((b + 7) // 8) * 8
    if pb <= MAX_TILE_B:
        return pb, pb                      # single grid step, whole batch
    tile = MAX_TILE_B
    return tile, ((b + tile - 1) // tile) * tile


@jax.jit
def fcnet_forward(x, packed):
    """x: (B, 1, 28, 28) or (B, 784). packed: output of fold_params."""
    w1, b1, w2, b2, w3, b3 = packed
    B = x.shape[0]
    x2d = x.reshape(B, D_IN).astype(jnp.bfloat16)      # x.view(-1, 784)

    tile_b, pad_b = _tile_and_pad(B)
    if pad_b != B:
        x2d = jnp.pad(x2d, ((0, pad_b - B), (0, 0)))

    # Weights/biases never change block index -> single buffer (no double
    # buffering waste).
    def wspec(shape):
        return pl.BlockSpec(shape, lambda i: (0, 0),
                            pipeline_mode=pl.Buffered(1))

    out = pl.pallas_call(
        fcnet_kernel,
        out_shape=jax.ShapeDtypeStruct((pad_b, D_OUT_PAD), jnp.float32),
        grid_spec=pltpu.PrefetchScalarGridSpec(
            num_scalar_prefetch=0,
            grid=(pad_b // tile_b,),
            in_specs=[
                pl.BlockSpec((tile_b, D_IN), lambda i: (i, 0)),   # x tile
                wspec((D_IN, D_H1)), wspec((1, D_H1)),
                wspec((D_H1, D_H2)), wspec((1, D_H2)),
                wspec((D_H2, D_OUT_PAD)), wspec((1, D_OUT_PAD)),
            ],
            out_specs=pl.BlockSpec((tile_b, D_OUT_PAD), lambda i: (i, 0)),
        ),
        compiler_params=pltpu.CompilerParams(
            dimension_semantics=("parallel",)),
    )(x2d, w1, b1, w2, b2, w3, b3)

    return out[:B, :D_OUT]


def init_params(key):
    """Deterministic init mimicking nn.Linear defaults; BN at its init state."""
    def linear(key, fan_in, fan_out):
        kw, kb = jax.random.split(key)
        bound = 1.0 / jnp.sqrt(fan_in)
        # stored transposed: (in, out)
        w = jax.random.uniform(kw, (fan_in, fan_out), jnp.float32, -bound, bound)
        b = jax.random.uniform(kb, (1, fan_out), jnp.float32, -bound, bound)
        return w, b

    k1, k2, k3 = jax.random.split(key, 3)
    w1, b1 = linear(k1, D_IN, D_H1)
    w2, b2 = linear(k2, D_H1, D_H2)
    w3, b3 = linear(k3, D_H2, D_OUT)

    eps = 1e-5
    def bn_fold(dim):
        gamma = jnp.ones((1, dim), jnp.float32)
        beta = jnp.zeros((1, dim), jnp.float32)
        running_mean = jnp.zeros((1, dim), jnp.float32)
        running_var = jnp.ones((1, dim), jnp.float32)
        scale = gamma / jnp.sqrt(running_var + eps)
        shift = beta - running_mean * scale
        return scale, shift

    s1, t1 = bn_fold(D_H1)
    s2, t2 = bn_fold(D_H2)
    return (w1, b1, s1, t1, w2, b2, s2, t2, w3, b3)


def fold_params(params):
    """Fold eval-mode BN into the Linear weights, cast to bf16, pad fc3."""
    (w1, b1, s1, t1, w2, b2, s2, t2, w3, b3) = params
    # (x @ W + b) * s + t  ==  x @ (W * s) + (b * s + t)
    w1f = (w1 * s1).astype(jnp.bfloat16)
    b1f = (b1 * s1 + t1).astype(jnp.float32)
    w2f = (w2 * s2).astype(jnp.bfloat16)
    b2f = (b2 * s2 + t2).astype(jnp.float32)
    # Lane-dense fc3: zero-pad weight columns, -1e30 bias on pad columns so
    # they vanish from the log_softmax.
    w3p = jnp.zeros((D_H2, D_OUT_PAD), jnp.float32).at[:, :D_OUT].set(w3)
    b3p = jnp.full((1, D_OUT_PAD), NEG_INF, jnp.float32).at[:, :D_OUT].set(b3)
    return (w1f, b1f, w2f, b2f, w3p.astype(jnp.bfloat16), b3p)


def reference_forward_f32(x, params):
    """Full-precision eval-mode reference (matches the PyTorch module)."""
    (w1, b1, s1, t1, w2, b2, s2, t2, w3, b3) = params
    h = x.reshape(x.shape[0], D_IN).astype(jnp.float32)
    h = jnp.maximum((h @ w1 + b1) * s1 + t1, 0.0)
    h = jnp.maximum((h @ w2 + b2) * s2 + t2, 0.0)
    logits = h @ w3 + b3
    return jax.nn.log_softmax(logits, axis=-1)


def reference_forward_packed(x, packed):
    """Reference on the same bf16-folded params (matches kernel arithmetic)."""
    w1, b1, w2, b2, w3, b3 = packed
    h = x.reshape(x.shape[0], D_IN).astype(jnp.bfloat16)
    h = jnp.maximum(jnp.dot(h, w1, preferred_element_type=jnp.float32) + b1,
                    0.0).astype(jnp.bfloat16)
    h = jnp.maximum(jnp.dot(h, w2, preferred_element_type=jnp.float32) + b2,
                    0.0).astype(jnp.bfloat16)
    logits = jnp.dot(h, w3, preferred_element_type=jnp.float32) + b3
    return jax.nn.log_softmax(logits[:, :D_OUT], axis=-1)


if __name__ == "__main__":
    key = jax.random.PRNGKey(0)
    kx, kp = jax.random.split(key)

    params = init_params(kp)
    packed = fold_params(params)

    # Small batch: single grid step, whole batch in one tile.
    B = 8
    x = jax.random.normal(kx, (B, 1, 28, 28), jnp.float32)   # NCHW, like MNIST
    out = jax.block_until_ready(fcnet_forward(x, packed))
    assert out.shape == (B, D_OUT)
    assert jnp.allclose(out, reference_forward_packed(x, packed),
                        atol=2e-3, rtol=2e-3), "mismatch vs bf16 reference"
    assert jnp.allclose(out, reference_forward_f32(x, params),
                        atol=5e-2, rtol=5e-2), "mismatch vs f32 reference"

    # Non-multiple batch: exercises wrapper-side padding + multi-step grid.
    B2 = 300
    x2 = jax.random.normal(kx, (B2, 1, 28, 28), jnp.float32)
    out2 = jax.block_until_ready(fcnet_forward(x2, packed))
    assert out2.shape == (B2, D_OUT)
    assert jnp.allclose(out2, reference_forward_packed(x2, packed),
                        atol=2e-3, rtol=2e-3), "mismatch vs bf16 reference (padded batch)"

    print("KERNEL_OK")
</pallas_src>

<mosaic_0001>
module attributes {stable_mosaic.version = 11 : i64} {
  func.func @fcnet_kernel(%arg0: i32, %arg1: memref<8x784xbf16, #tpu.memory_space<vmem>>, %arg2: memref<784x548xbf16, #tpu.memory_space<vmem>>, %arg3: memref<1x548xf32, #tpu.memory_space<vmem>>, %arg4: memref<548x252xbf16, #tpu.memory_space<vmem>>, %arg5: memref<1x252xf32, #tpu.memory_space<vmem>>, %arg6: memref<252x128xbf16, #tpu.memory_space<vmem>>, %arg7: memref<1x128xf32, #tpu.memory_space<vmem>>, %arg8: memref<8x128xf32, #tpu.memory_space<vmem>>) attributes {dimension_semantics = [#tpu.dimension_semantics<parallel>], iteration_bounds = array<i64: 1>, scalar_prefetch = 0 : i64, scratch_operands = 0 : i64, tpu.core_type = #tpu.core_type<tc>, window_params = [{transform_indices = @transform_0, window_bounds = array<i64: 8, 784>}, {pipeline_mode = #tpu.pipeline_mode<synchronous>, transform_indices = @transform_1, window_bounds = array<i64: 784, 548>}, {pipeline_mode = #tpu.pipeline_mode<synchronous>, transform_indices = @transform_2, window_bounds = array<i64: 1, 548>}, {pipeline_mode = #tpu.pipeline_mode<synchronous>, transform_indices = @transform_3, window_bounds = array<i64: 548, 252>}, {pipeline_mode = #tpu.pipeline_mode<synchronous>, transform_indices = @transform_4, window_bounds = array<i64: 1, 252>}, {pipeline_mode = #tpu.pipeline_mode<synchronous>, transform_indices = @transform_5, window_bounds = array<i64: 252, 128>}, {pipeline_mode = #tpu.pipeline_mode<synchronous>, transform_indices = @transform_6, window_bounds = array<i64: 1, 128>}, {transform_indices = @transform_7, window_bounds = array<i64: 8, 128>}]} {
    %c0 = arith.constant 0 : index
    %c0_0 = arith.constant 0 : index
    %0 = vector.load %arg1[%c0, %c0_0] : memref<8x784xbf16, #tpu.memory_space<vmem>>, vector<8x784xbf16>
    %c0_1 = arith.constant 0 : index
    %c0_2 = arith.constant 0 : index
    %1 = vector.load %arg2[%c0_1, %c0_2] : memref<784x548xbf16, #tpu.memory_space<vmem>>, vector<784x548xbf16>
    %cst = arith.constant dense<0.000000e+00> : vector<8x548xf32>
    %2 = tpu.matmul %0, %1, %cst {dimension_numbers = #tpu.dot_dimension_numbers<[1], [0], [0], [1], [0, 0, 1, 1], [], []>} : vector<8x784xbf16>, vector<784x548xbf16>, vector<8x548xf32> -> vector<8x548xf32>
    %c0_3 = arith.constant 0 : index
    %c0_4 = arith.constant 0 : index
    %3 = vector.load %arg3[%c0_3, %c0_4] : memref<1x548xf32, #tpu.memory_space<vmem>>, vector<1x548xf32>
    %4 = vector.broadcast %3 : vector<1x548xf32> to vector<8x548xf32>
    %5 = arith.addf %2, %4 : vector<8x548xf32>
    %cst_5 = arith.constant 0.000000e+00 : f32
    %6 = vector.broadcast %cst_5 : f32 to vector<8x548xf32>
    %7 = arith.maximumf %5, %6 : vector<8x548xf32>
    %8 = arith.truncf %7 : vector<8x548xf32> to vector<8x548xbf16>
    %c0_6 = arith.constant 0 : index
    %c0_7 = arith.constant 0 : index
    %9 = vector.load %arg4[%c0_6, %c0_7] : memref<548x252xbf16, #tpu.memory_space<vmem>>, vector<548x252xbf16>
    %cst_8 = arith.constant dense<0.000000e+00> : vector<8x252xf32>
    %10 = tpu.matmul %8, %9, %cst_8 {dimension_numbers = #tpu.dot_dimension_numbers<[1], [0], [0], [1], [0, 0, 1, 1], [], []>} : vector<8x548xbf16>, vector<548x252xbf16>, vector<8x252xf32> -> vector<8x252xf32>
    %c0_9 = arith.constant 0 : index
    %c0_10 = arith.constant 0 : index
    %11 = vector.load %arg5[%c0_9, %c0_10] : memref<1x252xf32, #tpu.memory_space<vmem>>, vector<1x252xf32>
    %12 = vector.broadcast %11 : vector<1x252xf32> to vector<8x252xf32>
    %13 = arith.addf %10, %12 : vector<8x252xf32>
    %cst_11 = arith.constant 0.000000e+00 : f32
    %14 = vector.broadcast %cst_11 : f32 to vector<8x252xf32>
    %15 = arith.maximumf %13, %14 : vector<8x252xf32>
    %16 = arith.truncf %15 : vector<8x252xf32> to vector<8x252xbf16>
    %c0_12 = arith.constant 0 : index
    %c0_13 = arith.constant 0 : index
    %17 = vector.load %arg6[%c0_12, %c0_13] : memref<252x128xbf16, #tpu.memory_space<vmem>>, vector<252x128xbf16>
    %cst_14 = arith.constant dense<0.000000e+00> : vector<8x128xf32>
    %18 = tpu.matmul %16, %17, %cst_14 {dimension_numbers = #tpu.dot_dimension_numbers<[1], [0], [0], [1], [0, 0, 1, 1], [], []>} : vector<8x252xbf16>, vector<252x128xbf16>, vector<8x128xf32> -> vector<8x128xf32>
    %c0_15 = arith.constant 0 : index
    %c0_16 = arith.constant 0 : index
    %19 = vector.load %arg7[%c0_15, %c0_16] : memref<1x128xf32, #tpu.memory_space<vmem>>, vector<1x128xf32>
    %20 = vector.broadcast %19 : vector<1x128xf32> to vector<8x128xf32>
    %21 = arith.addf %18, %20 : vector<8x128xf32>
    %cst_17 = arith.constant dense<0xFF800000> : vector<8xf32>
    %22 = vector.multi_reduction <maximumf>, %21, %cst_17 [1] : vector<8x128xf32> to vector<8xf32>
    %23 = vector.shape_cast %22 : vector<8xf32> to vector<8x1xf32>
    %24 = vector.broadcast %23 : vector<8x1xf32> to vector<8x128xf32>
    %25 = arith.subf %21, %24 : vector<8x128xf32>
    %26 = math.exp %25 : vector<8x128xf32>
    %cst_18 = arith.constant dense<0.000000e+00> : vector<8xf32>
    %27 = vector.multi_reduction <add>, %26, %cst_18 [1] : vector<8x128xf32> to vector<8xf32>
    %28 = vector.shape_cast %27 : vector<8xf32> to vector<8x1xf32>
    %29 = math.log %28 : vector<8x1xf32>
    %30 = vector.broadcast %29 : vector<8x1xf32> to vector<8x128xf32>
    %31 = arith.subf %25, %30 : vector<8x128xf32>
    %c0_19 = arith.constant 0 : index
    %c0_20 = arith.constant 0 : index
    %32 = vector.load %arg8[%c0_19, %c0_20] : memref<8x128xf32, #tpu.memory_space<vmem>>, vector<8x128xf32>
    tpu.vector_store %arg8[%c0_19, %c0_20], %31 {strides = array<i32>} : memref<8x128xf32, #tpu.memory_space<vmem>>, vector<8x128xf32>,
    return
  }
  func.func @transform_0(%arg0: i32) -> (i32, i32) {
    %c0_i32 = arith.constant 0 : i32
    %c0_i32_0 = arith.constant 0 : i32
    return %arg0, %c0_i32 : i32, i32
  }
  func.func @transform_1(%arg0: i32) -> (i32, i32) {
    %c0_i32 = arith.constant 0 : i32
    %c0_i32_0 = arith.constant 0 : i32
    %c0_i32_1 = arith.constant 0 : i32
    return %c0_i32, %c0_i32_0 : i32, i32
  }
  func.func @transform_2(%arg0: i32) -> (i32, i32) {
    %c0_i32 = arith.constant 0 : i32
    %c0_i32_0 = arith.constant 0 : i32
    %c0_i32_1 = arith.constant 0 : i32
    return %c0_i32, %c0_i32_0 : i32, i32
  }
  func.func @transform_3(%arg0: i32) -> (i32, i32) {
    %c0_i32 = arith.constant 0 : i32
    %c0_i32_0 = arith.constant 0 : i32
    %c0_i32_1 = arith.constant 0 : i32
    return %c0_i32, %c0_i32_0 : i32, i32
  }
  func.func @transform_4(%arg0: i32) -> (i32, i32) {
    %c0_i32 = arith.constant 0 : i32
    %c0_i32_0 = arith.constant 0 : i32
    %c0_i32_1 = arith.constant 0 : i32
    return %c0_i32, %c0_i32_0 : i32, i32
  }
  func.func @transform_5(%arg0: i32) -> (i32, i32) {
    %c0_i32 = arith.constant 0 : i32
    %c0_i32_0 = arith.constant 0 : i32
    %c0_i32_1 = arith.constant 0 : i32
    return %c0_i32, %c0_i32_0 : i32, i32
  }
  func.func @transform_6(%arg0: i32) -> (i32, i32) {
    %c0_i32 = arith.constant 0 : i32
    %c0_i32_0 = arith.constant 0 : i32
    %c0_i32_1 = arith.constant 0 : i32
    return %c0_i32, %c0_i32_0 : i32, i32
  }
  func.func @transform_7(%arg0: i32) -> (i32, i32) {
    %c0_i32 = arith.constant 0 : i32
    %c0_i32_0 = arith.constant 0 : i32
    return %arg0, %c0_i32 : i32, i32
  }
}

</mosaic_0001>

<llo_original>
// kernel: fcnet_forward.1
$region0: #{fcnet_forward.1}
  #allocation0 [shape = 'u32[]', space=smem, size = 0x4, offset = 0x4, fixed_abs, tag = 'smem constant byte address 0x4 - core index']
  #allocation1 [shape = 'u32[144,128]{1,0:T(1,128)}', space=vmem, size = 0x12000, scoped, tag = 'internal scratch']
  %s0 = inlined_call_operand.vmem [shape: bf16[8,784], index: 0, kind: input, shape index: {}]
  %s1 = inlined_call_operand.vmem [shape: bf16[784,548], index: 1, kind: input, shape index: {}]
  %s2 = inlined_call_operand.vmem [shape: f32[1,548], index: 2, kind: input, shape index: {}]
  %s3 = inlined_call_operand.vmem [shape: bf16[548,252], index: 3, kind: input, shape index: {}]
  %s4 = inlined_call_operand.vmem [shape: f32[1,252], index: 4, kind: input, shape index: {}]
  %s5 = inlined_call_operand.vmem [shape: bf16[252,128], index: 5, kind: input, shape index: {}]
  %s6 = inlined_call_operand.vmem [shape: f32[1,128], index: 6, kind: input, shape index: {}]
  %s7 = inlined_call_operand.hbm [shape: f32[8,128], index: 7, kind: output, shape index: {}]
  %s8 = sld [smem:[#allocation0]]
  $region38: #{fcnet_forward.1} parent=0
    _
  %s10 = ssub.s32 1, %s8
  %s11 = scalar_select 0, %s10, %s8
  $region1: #{fcnet_forward.1} parent=0
    #allocation2 [shape = 'u8[4096]{0}', space=vmem, size = 0x1000, scoped, tag = 'output window, operand 0, single buffered']
    #allocation3 [shape = 's32[1]{0}', space=sflag, size = 0x4, scoped, tag = 'scoped memory for fcnet_forward.1']
    %12 = vsyncpa [#allocation3], 0
    // Predicated region
    $region2: #{fcnet_forward.1} parent=1 // pred_check
      _
    $region3: #{fcnet_forward.1} parent=1 // pred_check_branch
      %14 = sbr.rel (0) target = $region5
    $region4: #{fcnet_forward.1} parent=1 // pred_region
      _
    $region5: #{fcnet_forward.1} parent=1 // pred_fallthru
      _
    // Predicated region
    $region6: #{fcnet_forward.1} parent=1 // pred_check
      _
    $region7: #{fcnet_forward.1} parent=1 // pred_check_branch
      %16 = sbr.rel (0) target = $region9
    $region8: #{fcnet_forward.1} parent=1 // pred_region
      _
    $region9: #{fcnet_forward.1} parent=1 // pred_fallthru
      _
    // Predicated region
    $region10: #{fcnet_forward.1} parent=1 // pred_check
      _
    $region11: #{fcnet_forward.1} parent=1 // pred_check_branch
      %18 = sbr.rel (0) target = $region13
    $region12: #{fcnet_forward.1} parent=1 // pred_region
      _
    $region13: #{fcnet_forward.1} parent=1 // pred_fallthru
      _
    // Predicated region
    $region14: #{fcnet_forward.1} parent=1 // pred_check
      _
    $region15: #{fcnet_forward.1} parent=1 // pred_check_branch
      %20 = sbr.rel (0) target = $region17
    $region16: #{fcnet_forward.1} parent=1 // pred_region
      _
    $region17: #{fcnet_forward.1} parent=1 // pred_fallthru
      _
    // Predicated region
    $region18: #{fcnet_forward.1} parent=1 // pred_check
      _
    $region19: #{fcnet_forward.1} parent=1 // pred_check_branch
      %22 = sbr.rel (0) target = $region21
    $region20: #{fcnet_forward.1} parent=1 // pred_region
      _
    $region21: #{fcnet_forward.1} parent=1 // pred_fallthru
      _
    // Predicated region
    $region22: #{fcnet_forward.1} parent=1 // pred_check
      _
    $region23: #{fcnet_forward.1} parent=1 // pred_check_branch
      %24 = sbr.rel (0) target = $region25
    $region24: #{fcnet_forward.1} parent=1 // pred_region
      _
    $region25: #{fcnet_forward.1} parent=1 // pred_fallthru
      _
    // Predicated region
    $region26: #{fcnet_forward.1} parent=1 // pred_check
      _
    $region27: #{fcnet_forward.1} parent=1 // pred_check_branch
      %26 = sbr.rel (0) target = $region29
    $region28: #{fcnet_forward.1} parent=1 // pred_region
      _
    $region29: #{fcnet_forward.1} parent=1 // pred_fallthru
      _
    %v28 = vld [vmem:[%s0] sm:$0xff]
    %v29 = vld [vmem:[%s0 + $0x8] sm:$0xff]
    %v30 = vld [vmem:[%s0 + $0x10] sm:$0xff]
    %v31 = vld [vmem:[%s0 + $0x18] sm:$0xf]
    %v32 = vld [vmem:[%s1] sm:$0xff]
    %v33 = vld [vmem:[%s1 + $0x8] sm:$0xff]
    %v34 = vld [vmem:[%s1 + $0x10] sm:$0xf]
    %v35 = vld [vmem:[%s1 + $0x14] sm:$0xff]
    %v36 = vld [vmem:[%s1 + $0x1c] sm:$0xff]
    %v37 = vld [vmem:[%s1 + $0x24] sm:$0xf]
    %v38 = vld [vmem:[%s1 + $0x28] sm:$0xff]
    %v39 = vld [vmem:[%s1 + $0x30] sm:$0xff]
    %v40 = vld [vmem:[%s1 + $0x38] sm:$0xf]
    %v41 = vld [vmem:[%s1 + $0x3c] sm:$0xff]
    %v42 = vld [vmem:[%s1 + $0x44] sm:$0xff]
    %v43 = vld [vmem:[%s1 + $0x4c] sm:$0xf]
    %v44 = vld [vmem:[%s1 + $0x50] sm:$0xff]
    %v45 = vld [vmem:[%s1 + $0x58] sm:$0xff]
    %v46 = vld [vmem:[%s1 + $0x60] sm:$0xf]
    %v47 = vld [vmem:[%s1 + $0x64] sm:$0xff]
    %v48 = vld [vmem:[%s1 + $0x6c] sm:$0xff]
    %v49 = vld [vmem:[%s1 + $0x74] sm:$0xf]
    %v50 = vld [vmem:[%s1 + $0x78] sm:$0xff]
    %v51 = vld [vmem:[%s1 + $0x80] sm:$0xff]
    %v52 = vld [vmem:[%s1 + $0x88] sm:$0xf]
    %v53 = vld [vmem:[%s1 + $0x8c] sm:$0xff]
    %v54 = vld [vmem:[%s1 + $0x94] sm:$0xff]
    %v55 = vld [vmem:[%s1 + $0x9c] sm:$0xf]
    %v56 = vld [vmem:[%s1 + $0xa0] sm:$0xff]
    %v57 = vld [vmem:[%s1 + $0xa8] sm:$0xff]
    %v58 = vld [vmem:[%s1 + $0xb0] sm:$0xf]
    %v59 = vld [vmem:[%s1 + $0xb4] sm:$0xff]
    %v60 = vld [vmem:[%s1 + $0xbc] sm:$0xff]
    %v61 = vld [vmem:[%s1 + $0xc4] sm:$0xf]
    %v62 = vld [vmem:[%s1 + $0xc8] sm:$0xff]
    %v63 = vld [vmem:[%s1 + $0xd0] sm:$0xff]
    %v64 = vld [vmem:[%s1 + $0xd8] sm:$0xf]
    %v65 = vld [vmem:[%s1 + $0xdc] sm:$0xff]
    %v66 = vld [vmem:[%s1 + $0xe4] sm:$0xff]
    %v67 = vld [vmem:[%s1 + $0xec] sm:$0xf]
    %v68 = vld [vmem:[%s1 + $0xf0] sm:$0xff]
    %v69 = vld [vmem:[%s1 + $0xf8] sm:$0xff]
    %v70 = vld [vmem:[%s1 + $0x100] sm:$0xf]
    %v71 = vld [vmem:[%s1 + $0x104] sm:$0xff]
    %v72 = vld [vmem:[%s1 + $0x10c] sm:$0xff]
    %v73 = vld [vmem:[%s1 + $0x114] sm:$0xf]
    %v74 = vld [vmem:[%s1 + $0x118] sm:$0xff]
    %v75 = vld [vmem:[%s1 + $0x120] sm:$0xff]
    %v76 = vld [vmem:[%s1 + $0x128] sm:$0xf]
    %v77 = vld [vmem:[%s1 + $0x12c] sm:$0xff]
    %v78 = vld [vmem:[%s1 + $0x134] sm:$0xff]
    %v79 = vld [vmem:[%s1 + $0x13c] sm:$0xf]
    %v80 = vld [vmem:[%s1 + $0x140] sm:$0xff]
    %v81 = vld [vmem:[%s1 + $0x148] sm:$0xff]
    %v82 = vld [vmem:[%s1 + $0x150] sm:$0xf]
    %v83 = vld [vmem:[%s1 + $0x154] sm:$0xff]
    %v84 = vld [vmem:[%s1 + $0x15c] sm:$0xff]
    %v85 = vld [vmem:[%s1 + $0x164] sm:$0xf]
    %v86 = vld [vmem:[%s1 + $0x168] sm:$0xff]
    %v87 = vld [vmem:[%s1 + $0x170] sm:$0xff]
    %v88 = vld [vmem:[%s1 + $0x178] sm:$0xf]
    %v89 = vld [vmem:[%s1 + $0x17c] sm:$0xff]
    %v90 = vld [vmem:[%s1 + $0x184] sm:$0xff]
    %v91 = vld [vmem:[%s1 + $0x18c] sm:$0xf]
    %v92 = vld [vmem:[%s1 + $0x190] sm:$0xff]
    %v93 = vld [vmem:[%s1 + $0x198] sm:$0xff]
    %v94 = vld [vmem:[%s1 + $0x1a0] sm:$0xf]
    %v95 = vld [vmem:[%s1 + $0x1a4] sm:$0xff]
    %v96 = vld [vmem:[%s1 + $0x1ac] sm:$0xff]
    %v97 = vld [vmem:[%s1 + $0x1b4] sm:$0xf]
    %v98 = vld [vmem:[%s1 + $0x1b8] sm:$0xff]
    %v99 = vld [vmem:[%s1 + $0x1c0] sm:$0xff]
    %v100 = vld [vmem:[%s1 + $0x1c8] sm:$0xf]
    %v101 = vld [vmem:[%s1 + $0x1cc] sm:$0xff]
    %v102 = vld [vmem:[%s1 + $0x1d4] sm:$0xff]
    %v103 = vld [vmem:[%s1 + $0x1dc] sm:$0xf]
    %v104 = vld [vmem:[%s1 + $0x1e0] sm:$0xff]
    %v105 = vld [vmem:[%s1 + $0x1e8] sm:$0xff]
    %v106 = vld [vmem:[%s1 + $0x1f0] sm:$0xf]
    %v107 = vld [vmem:[%s1 + $0x1f4] sm:$0xff]
    %v108 = vld [vmem:[%s1 + $0x1fc] sm:$0xff]
    %v109 = vld [vmem:[%s1 + $0x204] sm:$0xf]
    %v110 = vld [vmem:[%s1 + $0x208] sm:$0xff]
    %v111 = vld [vmem:[%s1 + $0x210] sm:$0xff]
    %v112 = vld [vmem:[%s1 + $0x218] sm:$0xf]
    %v113 = vld [vmem:[%s1 + $0x21c] sm:$0xff]
    %v114 = vld [vmem:[%s1 + $0x224] sm:$0xff]
    %v115 = vld [vmem:[%s1 + $0x22c] sm:$0xf]
    %v116 = vld [vmem:[%s1 + $0x230] sm:$0xff]
    %v117 = vld [vmem:[%s1 + $0x238] sm:$0xff]
    %v118 = vld [vmem:[%s1 + $0x240] sm:$0xf]
    %v119 = vld [vmem:[%s1 + $0x244] sm:$0xff]
    %v120 = vld [vmem:[%s1 + $0x24c] sm:$0xff]
    %v121 = vld [vmem:[%s1 + $0x254] sm:$0xf]
    %v122 = vld [vmem:[%s1 + $0x258] sm:$0xff]
    %v123 = vld [vmem:[%s1 + $0x260] sm:$0xff]
    %v124 = vld [vmem:[%s1 + $0x268] sm:$0xf]
    %v125 = vld [vmem:[%s1 + $0x26c] sm:$0xff]
    %v126 = vld [vmem:[%s1 + $0x274] sm:$0xff]
    %v127 = vld [vmem:[%s1 + $0x27c] sm:$0xf]
    %v128 = vld [vmem:[%s1 + $0x280] sm:$0xff]
    %v129 = vld [vmem:[%s1 + $0x288] sm:$0xff]
    %v130 = vld [vmem:[%s1 + $0x290] sm:$0xf]
    %v131 = vld [vmem:[%s1 + $0x294] sm:$0xff]
    %v132 = vld [vmem:[%s1 + $0x29c] sm:$0xff]
    %v133 = vld [vmem:[%s1 + $0x2a4] sm:$0xf]
    %v134 = vld [vmem:[%s1 + $0x2a8] sm:$0xff]
    %v135 = vld [vmem:[%s1 + $0x2b0] sm:$0xff]
    %v136 = vld [vmem:[%s1 + $0x2b8] sm:$0xf]
    %v137 = vld [vmem:[%s1 + $0x2bc] sm:$0xff]
    %v138 = vld [vmem:[%s1 + $0x2c4] sm:$0xff]
    %v139 = vld [vmem:[%s1 + $0x2cc] sm:$0xf]
    %v140 = vld [vmem:[%s1 + $0x2d0] sm:$0xff]
    %v141 = vld [vmem:[%s1 + $0x2d8] sm:$0xff]
    %v142 = vld [vmem:[%s1 + $0x2e0] sm:$0xf]
    %v143 = vld [vmem:[%s1 + $0x2e4] sm:$0xff]
    %v144 = vld [vmem:[%s1 + $0x2ec] sm:$0xff]
    %v145 = vld [vmem:[%s1 + $0x2f4] sm:$0xf]
    %v146 = vld [vmem:[%s1 + $0x2f8] sm:$0xff]
    %v147 = vld [vmem:[%s1 + $0x300] sm:$0xff]
    %v148 = vld [vmem:[%s1 + $0x308] sm:$0xf]
    %v149 = vld [vmem:[%s1 + $0x30c] sm:$0xff]
    %v150 = vld [vmem:[%s1 + $0x314] sm:$0xff]
    %v151 = vld [vmem:[%s1 + $0x31c] sm:$0xf]
    %v152 = vld [vmem:[%s1 + $0x320] sm:$0xff]
    %v153 = vld [vmem:[%s1 + $0x328] sm:$0xff]
    %v154 = vld [vmem:[%s1 + $0x330] sm:$0xf]
    %v155 = vld [vmem:[%s1 + $0x334] sm:$0xff]
    %v156 = vld [vmem:[%s1 + $0x33c] sm:$0xff]
    %v157 = vld [vmem:[%s1 + $0x344] sm:$0xf]
    %v158 = vld [vmem:[%s1 + $0x348] sm:$0xff]
    %v159 = vld [vmem:[%s1 + $0x350] sm:$0xff]
    %v160 = vld [vmem:[%s1 + $0x358] sm:$0xf]
    %v161 = vld [vmem:[%s1 + $0x35c] sm:$0xff]
    %v162 = vld [vmem:[%s1 + $0x364] sm:$0xff]
    %v163 = vld [vmem:[%s1 + $0x36c] sm:$0xf]
    %v164 = vld [vmem:[%s1 + $0x370] sm:$0xff]
    %v165 = vld [vmem:[%s1 + $0x378] sm:$0xff]
    %v166 = vld [vmem:[%s1 + $0x380] sm:$0xf]
    %v167 = vld [vmem:[%s1 + $0x384] sm:$0xff]
    %v168 = vld [vmem:[%s1 + $0x38c] sm:$0xff]
    %v169 = vld [vmem:[%s1 + $0x394] sm:$0xf]
    %v170 = vld [vmem:[%s1 + $0x398] sm:$0xff]
    %v171 = vld [vmem:[%s1 + $0x3a0] sm:$0xff]
    %v172 = vld [vmem:[%s1 + $0x3a8] sm:$0xf]
    %v173 = vld [vmem:[%s1 + $0x3ac] sm:$0xff]
    %v174 = vld [vmem:[%s1 + $0x3b4] sm:$0xff]
    %v175 = vld [vmem:[%s1 + $0x3bc] sm:$0xf]
    %v176 = vld [vmem:[%s1 + $0x3c0] sm:$0xff]
    %v177 = vld [vmem:[%s1 + $0x3c8] sm:$0xff]
    %v178 = vld [vmem:[%s1 + $0x3d0] sm:$0xf]
    %v179 = vld [vmem:[%s1 + $0x3d4] sm:$0xff]
    %v180 = vld [vmem:[%s1 + $0x3dc] sm:$0xff]
    %v181 = vld [vmem:[%s1 + $0x3e4] sm:$0xf]
    %v182 = vld [vmem:[%s1 + $0x3e8] sm:$0xff]
    %v183 = vld [vmem:[%s1 + $0x3f0] sm:$0xff]
    %v184 = vld [vmem:[%s1 + $0x3f8] sm:$0xf]
    %v185 = vld [vmem:[%s1 + $0x3fc] sm:$0xff]
    %v186 = vld [vmem:[%s1 + $0x404] sm:$0xff]
    %v187 = vld [vmem:[%s1 + $0x40c] sm:$0xf]
    %v188 = vld [vmem:[%s1 + $0x410] sm:$0xff]
    %v189 = vld [vmem:[%s1 + $0x418] sm:$0xff]
    %v190 = vld [vmem:[%s1 + $0x420] sm:$0xf]
    %v191 = vld [vmem:[%s1 + $0x424] sm:$0xff]
    %v192 = vld [vmem:[%s1 + $0x42c] sm:$0xff]
    %v193 = vld [vmem:[%s1 + $0x434] sm:$0xf]
    %v194 = vld [vmem:[%s1 + $0x438] sm:$0xff]
    %v195 = vld [vmem:[%s1 + $0x440] sm:$0xff]
    %v196 = vld [vmem:[%s1 + $0x448] sm:$0xf]
    %v197 = vld [vmem:[%s1 + $0x44c] sm:$0xff]
    %v198 = vld [vmem:[%s1 + $0x454] sm:$0xff]
    %v199 = vld [vmem:[%s1 + $0x45c] sm:$0xf]
    %v200 = vld [vmem:[%s1 + $0x460] sm:$0xff]
    %v201 = vld [vmem:[%s1 + $0x468] sm:$0xff]
    %v202 = vld [vmem:[%s1 + $0x470] sm:$0xf]
    %v203 = vld [vmem:[%s1 + $0x474] sm:$0xff]
    %v204 = vld [vmem:[%s1 + $0x47c] sm:$0xff]
    %v205 = vld [vmem:[%s1 + $0x484] sm:$0xf]
    %v206 = vld [vmem:[%s1 + $0x488] sm:$0xff]
    %v207 = vld [vmem:[%s1 + $0x490] sm:$0xff]
    %v208 = vld [vmem:[%s1 + $0x498] sm:$0xf]
    %v209 = vld [vmem:[%s1 + $0x49c] sm:$0xff]
    %v210 = vld [vmem:[%s1 + $0x4a4] sm:$0xff]
    %v211 = vld [vmem:[%s1 + $0x4ac] sm:$0xf]
    %v212 = vld [vmem:[%s1 + $0x4b0] sm:$0xff]
    %v213 = vld [vmem:[%s1 + $0x4b8] sm:$0xff]
    %v214 = vld [vmem:[%s1 + $0x4c0] sm:$0xf]
    %v215 = vld [vmem:[%s1 + $0x4c4] sm:$0xff]
    %v216 = vld [vmem:[%s1 + $0x4cc] sm:$0xff]
    %v217 = vld [vmem:[%s1 + $0x4d4] sm:$0xf]
    %v218 = vld [vmem:[%s1 + $0x4d8] sm:$0xff]
    %v219 = vld [vmem:[%s1 + $0x4e0] sm:$0xff]
    %v220 = vld [vmem:[%s1 + $0x4e8] sm:$0xf]
    %v221 = vld [vmem:[%s1 + $0x4ec] sm:$0xff]
    %v222 = vld [vmem:[%s1 + $0x4f4] sm:$0xff]
    %v223 = vld [vmem:[%s1 + $0x4fc] sm:$0xf]
    %v224 = vld [vmem:[%s1 + $0x500] sm:$0xff]
    %v225 = vld [vmem:[%s1 + $0x508] sm:$0xff]
    %v226 = vld [vmem:[%s1 + $0x510] sm:$0xf]
    %v227 = vld [vmem:[%s1 + $0x514] sm:$0xff]
    %v228 = vld [vmem:[%s1 + $0x51c] sm:$0xff]
    %v229 = vld [vmem:[%s1 + $0x524] sm:$0xf]
    %v230 = vld [vmem:[%s1 + $0x528] sm:$0xff]
    %v231 = vld [vmem:[%s1 + $0x530] sm:$0xff]
    %v232 = vld [vmem:[%s1 + $0x538] sm:$0xf]
    %v233 = vld [vmem:[%s1 + $0x53c] sm:$0xff]
    %v234 = vld [vmem:[%s1 + $0x544] sm:$0xff]
    %v235 = vld [vmem:[%s1 + $0x54c] sm:$0xf]
    %v236 = vld [vmem:[%s1 + $0x550] sm:$0xff]
    %v237 = vld [vmem:[%s1 + $0x558] sm:$0xff]
    %v238 = vld [vmem:[%s1 + $0x560] sm:$0xf]
    %v239 = vld [vmem:[%s1 + $0x564] sm:$0xff]
    %v240 = vld [vmem:[%s1 + $0x56c] sm:$0xff]
    %v241 = vld [vmem:[%s1 + $0x574] sm:$0xf]
    %v242 = vld [vmem:[%s1 + $0x578] sm:$0xff]
    %v243 = vld [vmem:[%s1 + $0x580] sm:$0xff]
    %v244 = vld [vmem:[%s1 + $0x588] sm:$0xf]
    %v245 = vld [vmem:[%s1 + $0x58c] sm:$0xff]
    %v246 = vld [vmem:[%s1 + $0x594] sm:$0xff]
    %v247 = vld [vmem:[%s1 + $0x59c] sm:$0xf]
    %v248 = vld [vmem:[%s1 + $0x5a0] sm:$0xff]
    %v249 = vld [vmem:[%s1 + $0x5a8] sm:$0xff]
    %v250 = vld [vmem:[%s1 + $0x5b0] sm:$0xf]
    %v251 = vld [vmem:[%s1 + $0x5b4] sm:$0xff]
    %v252 = vld [vmem:[%s1 + $0x5bc] sm:$0xff]
    %v253 = vld [vmem:[%s1 + $0x5c4] sm:$0xf]
    %v254 = vld [vmem:[%s1 + $0x5c8] sm:$0xff]
    %v255 = vld [vmem:[%s1 + $0x5d0] sm:$0xff]
    %v256 = vld [vmem:[%s1 + $0x5d8] sm:$0xf]
    %v257 = vld [vmem:[%s1 + $0x5dc] sm:$0xff]
    %v258 = vld [vmem:[%s1 + $0x5e4] sm:$0xff]
    %v259 = vld [vmem:[%s1 + $0x5ec] sm:$0xf]
    %v260 = vld [vmem:[%s1 + $0x5f0] sm:$0xff]
    %v261 = vld [vmem:[%s1 + $0x5f8] sm:$0xff]
    %v262 = vld [vmem:[%s1 + $0x600] sm:$0xf]
    %v263 = vld [vmem:[%s1 + $0x604] sm:$0xff]
    %v264 = vld [vmem:[%s1 + $0x60c] sm:$0xff]
    %v265 = vld [vmem:[%s1 + $0x614] sm:$0xf]
    %v266 = vld [vmem:[%s1 + $0x618] sm:$0xff]
    %v267 = vld [vmem:[%s1 + $0x620] sm:$0xff]
    %v268 = vld [vmem:[%s1 + $0x628] sm:$0xf]
    %v269 = vld [vmem:[%s1 + $0x62c] sm:$0xff]
    %v270 = vld [vmem:[%s1 + $0x634] sm:$0xff]
    %v271 = vld [vmem:[%s1 + $0x63c] sm:$0xf]
    %v272 = vld [vmem:[%s1 + $0x640] sm:$0xff]
    %v273 = vld [vmem:[%s1 + $0x648] sm:$0xff]
    %v274 = vld [vmem:[%s1 + $0x650] sm:$0xf]
    %v275 = vld [vmem:[%s1 + $0x654] sm:$0xff]
    %v276 = vld [vmem:[%s1 + $0x65c] sm:$0xff]
    %v277 = vld [vmem:[%s1 + $0x664] sm:$0xf]
    %v278 = vld [vmem:[%s1 + $0x668] sm:$0xff]
    %v279 = vld [vmem:[%s1 + $0x670] sm:$0xff]
    %v280 = vld [vmem:[%s1 + $0x678] sm:$0xf]
    %v281 = vld [vmem:[%s1 + $0x67c] sm:$0xff]
    %v282 = vld [vmem:[%s1 + $0x684] sm:$0xff]
    %v283 = vld [vmem:[%s1 + $0x68c] sm:$0xf]
    %v284 = vld [vmem:[%s1 + $0x690] sm:$0xff]
    %v285 = vld [vmem:[%s1 + $0x698] sm:$0xff]
    %v286 = vld [vmem:[%s1 + $0x6a0] sm:$0xf]
    %v287 = vld [vmem:[%s1 + $0x6a4] sm:$0xff]
    %v288 = vld [vmem:[%s1 + $0x6ac] sm:$0xff]
    %v289 = vld [vmem:[%s1 + $0x6b4] sm:$0xf]
    %v290 = vld [vmem:[%s1 + $0x6b8] sm:$0xff]
    %v291 = vld [vmem:[%s1 + $0x6c0] sm:$0xff]
    %v292 = vld [vmem:[%s1 + $0x6c8] sm:$0xf]
    %v293 = vld [vmem:[%s1 + $0x6cc] sm:$0xff]
    %v294 = vld [vmem:[%s1 + $0x6d4] sm:$0xff]
    %v295 = vld [vmem:[%s1 + $0x6dc] sm:$0xf]
    %v296 = vld [vmem:[%s1 + $0x6e0] sm:$0xff]
    %v297 = vld [vmem:[%s1 + $0x6e8] sm:$0xff]
    %v298 = vld [vmem:[%s1 + $0x6f0] sm:$0xf]
    %v299 = vld [vmem:[%s1 + $0x6f4] sm:$0xff]
    %v300 = vld [vmem:[%s1 + $0x6fc] sm:$0xff]
    %v301 = vld [vmem:[%s1 + $0x704] sm:$0xf]
    %v302 = vld [vmem:[%s1 + $0x708] sm:$0xff]
    %v303 = vld [vmem:[%s1 + $0x710] sm:$0xff]
    %v304 = vld [vmem:[%s1 + $0x718] sm:$0xf]
    %v305 = vld [vmem:[%s1 + $0x71c] sm:$0xff]
    %v306 = vld [vmem:[%s1 + $0x724] sm:$0xff]
    %v307 = vld [vmem:[%s1 + $0x72c] sm:$0xf]
    %v308 = vld [vmem:[%s1 + $0x730] sm:$0xff]
    %v309 = vld [vmem:[%s1 + $0x738] sm:$0xff]
    %v310 = vld [vmem:[%s1 + $0x740] sm:$0xf]
    %v311 = vld [vmem:[%s1 + $0x744] sm:$0xff]
    %v312 = vld [vmem:[%s1 + $0x74c] sm:$0xff]
    %v313 = vld [vmem:[%s1 + $0x754] sm:$0xf]
    %v314 = vld [vmem:[%s1 + $0x758] sm:$0xff]
    %v315 = vld [vmem:[%s1 + $0x760] sm:$0xff]
    %v316 = vld [vmem:[%s1 + $0x768] sm:$0xf]
    %v317 = vld [vmem:[%s1 + $0x76c] sm:$0xff]
    %v318 = vld [vmem:[%s1 + $0x774] sm:$0xff]
    %v319 = vld [vmem:[%s1 + $0x77c] sm:$0xf]
    %v320 = vld [vmem:[%s1 + $0x780] sm:$0xff]
    %v321 = vld [vmem:[%s1 + $0x788] sm:$0xff]
    %v322 = vld [vmem:[%s1 + $0x790] sm:$0xf]
    %v323 = vld [vmem:[%s1 + $0x794] sm:$0xff]
    %v324 = vld [vmem:[%s1 + $0x79c] sm:$0xff]
    %v325 = vld [vmem:[%s1 + $0x7a4] sm:$0xf]
    %v326 = vld [vmem:[%s2] sm:$0x1f]
    %v328 = vlaneseq
    %v329 = vshrl.u32 %v328, 7
    %v330 = vsub.s32 0, %v329
    %v331 = vrot.slane %v326, %v330
    %v332 = vlaneseq
    %v333 = vshrl.u32 %v332, 7
    %v334 = vsub.s32 1, %v333
    %v335 = vrot.slane %v326, %v334
    %v336 = vlaneseq
    %v337 = vshrl.u32 %v336, 7
    %v338 = vsub.s32 2, %v337
    %v339 = vrot.slane %v326, %v338
    %v340 = vlaneseq
    %v341 = vshrl.u32 %v340, 7
    %v342 = vsub.s32 3, %v341
    %v343 = vrot.slane %v326, %v342
    %v344 = vlaneseq
    %v345 = vshrl.u32 %v344, 7
    %v346 = vsub.s32 4, %v345
    %v347 = vrot.slane %v326, %v346
    %v357 = vunpack.c.l.b16 %v28
    %v358 = vunpack.c.h.b16 %v28
    %v359 = vunpack.c.l.b16 %v29
    %v360 = vunpack.c.h.b16 %v29
    %v361 = vunpack.c.l.b16 %v30
    %v362 = vunpack.c.h.b16 %v30
    %v363 = vunpack.c.l.b16 %v31
    %v364 = vpack.c.b16 %v357, %v357
    %v365 = vpack.c.b16 %v358, %v358
    %v366 = vpack.c.b16 %v359, %v359
    %v367 = vpack.c.b16 %v360, %v360
    %v368 = vpack.c.b16 %v361, %v361
    %v369 = vpack.c.b16 %v362, %v362
    %v370 = vpack.c.b16 %v363, %v363
    %v671 = vunpack.c.l.b16 %v32
    %v672 = vunpack.c.h.b16 %v32
    %v673 = vunpack.c.l.b16 %v33
    %v674 = vunpack.c.h.b16 %v33
    %v675 = vunpack.c.l.b16 %v34
    %v676 = vunpack.c.l.b16 %v35
    %v677 = vunpack.c.h.b16 %v35
    %v678 = vunpack.c.l.b16 %v36
    %v679 = vunpack.c.h.b16 %v36
    %v680 = vunpack.c.l.b16 %v37
    %v681 = vunpack.c.l.b16 %v38
    %v682 = vunpack.c.h.b16 %v38
    %v683 = vunpack.c.l.b16 %v39
    %v684 = vunpack.c.h.b16 %v39
    %v685 = vunpack.c.l.b16 %v40
    %v686 = vunpack.c.l.b16 %v41
    %v687 = vunpack.c.h.b16 %v41
    %v688 = vunpack.c.l.b16 %v42
    %v689 = vunpack.c.h.b16 %v42
    %v690 = vunpack.c.l.b16 %v43
    %v691 = vunpack.c.l.b16 %v44
    %v692 = vunpack.c.h.b16 %v44
    %v693 = vunpack.c.l.b16 %v45
    %v694 = vunpack.c.h.b16 %v45
    %v695 = vunpack.c.l.b16 %v46
    %v696 = vunpack.c.l.b16 %v47
    %v697 = vunpack.c.h.b16 %v47
    %v698 = vunpack.c.l.b16 %v48
    %v699 = vunpack.c.h.b16 %v48
    %v700 = vunpack.c.l.b16 %v49
    %v701 = vunpack.c.l.b16 %v50
    %v702 = vunpack.c.h.b16 %v50
    %v703 = vunpack.c.l.b16 %v51
    %v704 = vunpack.c.h.b16 %v51
    %v705 = vunpack.c.l.b16 %v52
    %v706 = vunpack.c.l.b16 %v53
    %v707 = vunpack.c.h.b16 %v53
    %v708 = vunpack.c.l.b16 %v54
    %v709 = vunpack.c.h.b16 %v54
    %v710 = vunpack.c.l.b16 %v55
    %v711 = vunpack.c.l.b16 %v56
    %v712 = vunpack.c.h.b16 %v56
    %v713 = vunpack.c.l.b16 %v57
    %v714 = vunpack.c.h.b16 %v57
    %v715 = vunpack.c.l.b16 %v58
    %v716 = vunpack.c.l.b16 %v59
    %v717 = vunpack.c.h.b16 %v59
    %v718 = vunpack.c.l.b16 %v60
    %v719 = vunpack.c.h.b16 %v60
    %v720 = vunpack.c.l.b16 %v61
    %v721 = vunpack.c.l.b16 %v62
    %v722 = vunpack.c.h.b16 %v62
    %v723 = vunpack.c.l.b16 %v63
    %v724 = vunpack.c.h.b16 %v63
    %v725 = vunpack.c.l.b16 %v64
    %v726 = vunpack.c.l.b16 %v65
    %v727 = vunpack.c.h.b16 %v65
    %v728 = vunpack.c.l.b16 %v66
    %v729 = vunpack.c.h.b16 %v66
    %v730 = vunpack.c.l.b16 %v67
    %v731 = vunpack.c.l.b16 %v68
    %v732 = vunpack.c.h.b16 %v68
    %v733 = vunpack.c.l.b16 %v69
    %v734 = vunpack.c.h.b16 %v69
    %v735 = vunpack.c.l.b16 %v70
    %v736 = vunpack.c.l.b16 %v71
    %v737 = vunpack.c.h.b16 %v71
    %v738 = vunpack.c.l.b16 %v72
    %v739 = vunpack.c.h.b16 %v72
    %v740 = vunpack.c.l.b16 %v73
    %v741 = vunpack.c.l.b16 %v74
    %v742 = vunpack.c.h.b16 %v74
    %v743 = vunpack.c.l.b16 %v75
    %v744 = vunpack.c.h.b16 %v75
    %v745 = vunpack.c.l.b16 %v76
    %v746 = vunpack.c.l.b16 %v77
    %v747 = vunpack.c.h.b16 %v77
    %v748 = vunpack.c.l.b16 %v78
    %v749 = vunpack.c.h.b16 %v78
    %v750 = vunpack.c.l.b16 %v79
    %v751 = vunpack.c.l.b16 %v80
    %v752 = vunpack.c.h.b16 %v80
    %v753 = vunpack.c.l.b16 %v81
    %v754 = vunpack.c.h.b16 %v81
    %v755 = vunpack.c.l.b16 %v82
    %v756 = vunpack.c.l.b16 %v83
    %v757 = vunpack.c.h.b16 %v83
    %v758 = vunpack.c.l.b16 %v84
    %v759 = vunpack.c.h.b16 %v84
    %v760 = vunpack.c.l.b16 %v85
    %v761 = vunpack.c.l.b16 %v86
    %v762 = vunpack.c.h.b16 %v86
    %v763 = vunpack.c.l.b16 %v87
    %v764 = vunpack.c.h.b16 %v87
    %v765 = vunpack.c.l.b16 %v88
    %v766 = vunpack.c.l.b16 %v89
    %v767 = vunpack.c.h.b16 %v89
    %v768 = vunpack.c.l.b16 %v90
    %v769 = vunpack.c.h.b16 %v90
    %v770 = vunpack.c.l.b16 %v91
    %v771 = vunpack.c.l.b16 %v92
    %v772 = vunpack.c.h.b16 %v92
    %v773 = vunpack.c.l.b16 %v93
    %v774 = vunpack.c.h.b16 %v93
    %v775 = vunpack.c.l.b16 %v94
    %v776 = vunpack.c.l.b16 %v95
    %v777 = vunpack.c.h.b16 %v95
    %v778 = vunpack.c.l.b16 %v96
    %v779 = vunpack.c.h.b16 %v96
    %v780 = vunpack.c.l.b16 %v97
    %v781 = vunpack.c.l.b16 %v98
    %v782 = vunpack.c.h.b16 %v98
    %v783 = vunpack.c.l.b16 %v99
    %v784 = vunpack.c.h.b16 %v99
    %v785 = vunpack.c.l.b16 %v100
    %v786 = vunpack.c.l.b16 %v101
    %v787 = vunpack.c.h.b16 %v101
    %v788 = vunpack.c.l.b16 %v102
    %v789 = vunpack.c.h.b16 %v102
    %v790 = vunpack.c.l.b16 %v103
    %v791 = vunpack.c.l.b16 %v104
    %v792 = vunpack.c.h.b16 %v104
    %v793 = vunpack.c.l.b16 %v105
    %v794 = vunpack.c.h.b16 %v105
    %v795 = vunpack.c.l.b16 %v106
    %v796 = vunpack.c.l.b16 %v107
    %v797 = vunpack.c.h.b16 %v107
    %v798 = vunpack.c.l.b16 %v108
    %v799 = vunpack.c.h.b16 %v108
    %v800 = vunpack.c.l.b16 %v109
    %v801 = vunpack.c.l.b16 %v110
    %v802 = vunpack.c.h.b16 %v110
    %v803 = vunpack.c.l.b16 %v111
    %v804 = vunpack.c.h.b16 %v111
    %v805 = vunpack.c.l.b16 %v112
    %v806 = vunpack.c.l.b16 %v113
    %v807 = vunpack.c.h.b16 %v113
    %v808 = vunpack.c.l.b16 %v114
    %v809 = vunpack.c.h.b16 %v114
    %v810 = vunpack.c.l.b16 %v115
    %v811 = vunpack.c.l.b16 %v116
    %v812 = vunpack.c.h.b16 %v116
    %v813 = vunpack.c.l.b16 %v117
    %v814 = vunpack.c.h.b16 %v117
    %v815 = vunpack.c.l.b16 %v118
    %v816 = vunpack.c.l.b16 %v119
    %v817 = vunpack.c.h.b16 %v119
    %v818 = vunpack.c.l.b16 %v120
    %v819 = vunpack.c.h.b16 %v120
    %v820 = vunpack.c.l.b16 %v121
    %v821 = vunpack.c.l.b16 %v122
    %v822 = vunpack.c.h.b16 %v122
    %v823 = vunpack.c.l.b16 %v123
    %v824 = vunpack.c.h.b16 %v123
    %v825 = vunpack.c.l.b16 %v124
    %v826 = vunpack.c.l.b16 %v125
    %v827 = vunpack.c.h.b16 %v125
    %v828 = vunpack.c.l.b16 %v126
    %v829 = vunpack.c.h.b16 %v126
    %v830 = vunpack.c.l.b16 %v127
    %v831 = vunpack.c.l.b16 %v128
    %v832 = vunpack.c.h.b16 %v128
    %v833 = vunpack.c.l.b16 %v129
    %v834 = vunpack.c.h.b16 %v129
    %v835 = vunpack.c.l.b16 %v130
    %v836 = vunpack.c.l.b16 %v131
    %v837 = vunpack.c.h.b16 %v131
    %v838 = vunpack.c.l.b16 %v132
    %v839 = vunpack.c.h.b16 %v132
    %v840 = vunpack.c.l.b16 %v133
    %v841 = vunpack.c.l.b16 %v134
    %v842 = vunpack.c.h.b16 %v134
    %v843 = vunpack.c.l.b16 %v135
    %v844 = vunpack.c.h.b16 %v135
    %v845 = vunpack.c.l.b16 %v136
    %v846 = vunpack.c.l.b16 %v137
    %v847 = vunpack.c.h.b16 %v137
    %v848 = vunpack.c.l.b16 %v138
    %v849 = vunpack.c.h.b16 %v138
    %v850 = vunpack.c.l.b16 %v139
    %v851 = vunpack.c.l.b16 %v140
    %v852 = vunpack.c.h.b16 %v140
    %v853 = vunpack.c.l.b16 %v141
    %v854 = vunpack.c.h.b16 %v141
    %v855 = vunpack.c.l.b16 %v142
    %v856 = vunpack.c.l.b16 %v143
    %v857 = vunpack.c.h.b16 %v143
    %v858 = vunpack.c.l.b16 %v144
    %v859 = vunpack.c.h.b16 %v144
    %v860 = vunpack.c.l.b16 %v145
    %v861 = vunpack.c.l.b16 %v146
    %v862 = vunpack.c.h.b16 %v146
    %v863 = vunpack.c.l.b16 %v147
    %v864 = vunpack.c.h.b16 %v147
    %v865 = vunpack.c.l.b16 %v148
    %v866 = vunpack.c.l.b16 %v149
    %v867 = vunpack.c.h.b16 %v149
    %v868 = vunpack.c.l.b16 %v150
    %v869 = vunpack.c.h.b16 %v150
    %v870 = vunpack.c.l.b16 %v151
    %v871 = vunpack.c.l.b16 %v152
    %v872 = vunpack.c.h.b16 %v152
    %v873 = vunpack.c.l.b16 %v153
    %v874 = vunpack.c.h.b16 %v153
    %v875 = vunpack.c.l.b16 %v154
    %v876 = vunpack.c.l.b16 %v155
    %v877 = vunpack.c.h.b16 %v155
    %v878 = vunpack.c.l.b16 %v156
    %v879 = vunpack.c.h.b16 %v156
    %v880 = vunpack.c.l.b16 %v157
    %v881 = vunpack.c.l.b16 %v158
    %v882 = vunpack.c.h.b16 %v158
    %v883 = vunpack.c.l.b16 %v159
    %v884 = vunpack.c.h.b16 %v159
    %v885 = vunpack.c.l.b16 %v160
    %v886 = vunpack.c.l.b16 %v161
    %v887 = vunpack.c.h.b16 %v161
    %v888 = vunpack.c.l.b16 %v162
    %v889 = vunpack.c.h.b16 %v162
    %v890 = vunpack.c.l.b16 %v163
    %v891 = vunpack.c.l.b16 %v164
    %v892 = vunpack.c.h.b16 %v164
    %v893 = vunpack.c.l.b16 %v165
    %v894 = vunpack.c.h.b16 %v165
    %v895 = vunpack.c.l.b16 %v166
    %v896 = vunpack.c.l.b16 %v167
    %v897 = vunpack.c.h.b16 %v167
    %v898 = vunpack.c.l.b16 %v168
    %v899 = vunpack.c.h.b16 %v168
    %v900 = vunpack.c.l.b16 %v169
    %v901 = vunpack.c.l.b16 %v170
    %v902 = vunpack.c.h.b16 %v170
    %v903 = vunpack.c.l.b16 %v171
    %v904 = vunpack.c.h.b16 %v171
    %v905 = vunpack.c.l.b16 %v172
    %v906 = vunpack.c.l.b16 %v173
    %v907 = vunpack.c.h.b16 %v173
    %v908 = vunpack.c.l.b16 %v174
    %v909 = vunpack.c.h.b16 %v174
    %v910 = vunpack.c.l.b16 %v175
    %v911 = vunpack.c.l.b16 %v176
    %v912 = vunpack.c.h.b16 %v176
    %v913 = vunpack.c.l.b16 %v177
    %v914 = vunpack.c.h.b16 %v177
    %v915 = vunpack.c.l.b16 %v178
    %v916 = vunpack.c.l.b16 %v179
    %v917 = vunpack.c.h.b16 %v179
    %v918 = vunpack.c.l.b16 %v180
    %v919 = vunpack.c.h.b16 %v180
    %v920 = vunpack.c.l.b16 %v181
    %v921 = vunpack.c.l.b16 %v182
    %v922 = vunpack.c.h.b16 %v182
    %v923 = vunpack.c.l.b16 %v183
    %v924 = vunpack.c.h.b16 %v183
    %v925 = vunpack.c.l.b16 %v184
    %v926 = vunpack.c.l.b16 %v185
    %v927 = vunpack.c.h.b16 %v185
    %v928 = vunpack.c.l.b16 %v186
    %v929 = vunpack.c.h.b16 %v186
    %v930 = vunpack.c.l.b16 %v187
    %v931 = vunpack.c.l.b16 %v188
    %v932 = vunpack.c.h.b16 %v188
    %v933 = vunpack.c.l.b16 %v189
    %v934 = vunpack.c.h.b16 %v189
    %v935 = vunpack.c.l.b16 %v190
    %v936 = vunpack.c.l.b16 %v191
    %v937 = vunpack.c.h.b16 %v191
    %v938 = vunpack.c.l.b16 %v192
    %v939 = vunpack.c.h.b16 %v192
    %v940 = vunpack.c.l.b16 %v193
    %v941 = vunpack.c.l.b16 %v194
    %v942 = vunpack.c.h.b16 %v194
    %v943 = vunpack.c.l.b16 %v195
    %v944 = vunpack.c.h.b16 %v195
    %v945 = vunpack.c.l.b16 %v196
    %v946 = vunpack.c.l.b16 %v197
    %v947 = vunpack.c.h.b16 %v197
    %v948 = vunpack.c.l.b16 %v198
    %v949 = vunpack.c.h.b16 %v198
    %v950 = vunpack.c.l.b16 %v199
    %v951 = vunpack.c.l.b16 %v200
    %v952 = vunpack.c.h.b16 %v200
    %v953 = vunpack.c.l.b16 %v201
    %v954 = vunpack.c.h.b16 %v201
    %v955 = vunpack.c.l.b16 %v202
    %v956 = vunpack.c.l.b16 %v203
    %v957 = vunpack.c.h.b16 %v203
    %v958 = vunpack.c.l.b16 %v204
    %v959 = vunpack.c.h.b16 %v204
    %v960 = vunpack.c.l.b16 %v205
    %v961 = vunpack.c.l.b16 %v206
    %v962 = vunpack.c.h.b16 %v206
    %v963 = vunpack.c.l.b16 %v207
    %v964 = vunpack.c.h.b16 %v207
    %v965 = vunpack.c.l.b16 %v208
    %v966 = vunpack.c.l.b16 %v209
    %v967 = vunpack.c.h.b16 %v209
    %v968 = vunpack.c.l.b16 %v210
    %v969 = vunpack.c.h.b16 %v210
    %v970 = vunpack.c.l.b16 %v211
    %v971 = vunpack.c.l.b16 %v212
    %v972 = vunpack.c.h.b16 %v212
    %v973 = vunpack.c.l.b16 %v213
    %v974 = vunpack.c.h.b16 %v213
    %v975 = vunpack.c.l.b16 %v214
    %v976 = vunpack.c.l.b16 %v215
    %v977 = vunpack.c.h.b16 %v215
    %v978 = vunpack.c.l.b16 %v216
    %v979 = vunpack.c.h.b16 %v216
    %v980 = vunpack.c.l.b16 %v217
    %v981 = vunpack.c.l.b16 %v218
    %v982 = vunpack.c.h.b16 %v218
    %v983 = vunpack.c.l.b16 %v219
    %v984 = vunpack.c.h.b16 %v219
    %v985 = vunpack.c.l.b16 %v220
    %v986 = vunpack.c.l.b16 %v221
    %v987 = vunpack.c.h.b16 %v221
    %v988 = vunpack.c.l.b16 %v222
    %v989 = vunpack.c.h.b16 %v222
    %v990 = vunpack.c.l.b16 %v223
    %v991 = vunpack.c.l.b16 %v224
    %v992 = vunpack.c.h.b16 %v224
    %v993 = vunpack.c.l.b16 %v225
    %v994 = vunpack.c.h.b16 %v225
    %v995 = vunpack.c.l.b16 %v226
    %v996 = vunpack.c.l.b16 %v227
    %v997 = vunpack.c.h.b16 %v227
    %v998 = vunpack.c.l.b16 %v228
    %v999 = vunpack.c.h.b16 %v228
    %v1000 = vunpack.c.l.b16 %v229
    %v1001 = vunpack.c.l.b16 %v230
    %v1002 = vunpack.c.h.b16 %v230
    %v1003 = vunpack.c.l.b16 %v231
    %v1004 = vunpack.c.h.b16 %v231
    %v1005 = vunpack.c.l.b16 %v232
    %v1006 = vunpack.c.l.b16 %v233
    %v1007 = vunpack.c.h.b16 %v233
    %v1008 = vunpack.c.l.b16 %v234
    %v1009 = vunpack.c.h.b16 %v234
    %v1010 = vunpack.c.l.b16 %v235
    %v1011 = vunpack.c.l.b16 %v236
    %v1012 = vunpack.c.h.b16 %v236
    %v1013 = vunpack.c.l.b16 %v237
    %v1014 = vunpack.c.h.b16 %v237
    %v1015 = vunpack.c.l.b16 %v238
    %v1016 = vunpack.c.l.b16 %v239
    %v1017 = vunpack.c.h.b16 %v239
    %v1018 = vunpack.c.l.b16 %v240
    %v1019 = vunpack.c.h.b16 %v240
    %v1020 = vunpack.c.l.b16 %v241
    %v1021 = vunpack.c.l.b16 %v242
    %v1022 = vunpack.c.h.b16 %v242
    %v1023 = vunpack.c.l.b16 %v243
    %v1024 = vunpack.c.h.b16 %v243
    %v1025 = vunpack.c.l.b16 %v244
    %v1026 = vunpack.c.l.b16 %v245
    %v1027 = vunpack.c.h.b16 %v245
    %v1028 = vunpack.c.l.b16 %v246
    %v1029 = vunpack.c.h.b16 %v246
    %v1030 = vunpack.c.l.b16 %v247
    %v1031 = vunpack.c.l.b16 %v248
    %v1032 = vunpack.c.h.b16 %v248
    %v1033 = vunpack.c.l.b16 %v249
    %v1034 = vunpack.c.h.b16 %v249
    %v1035 = vunpack.c.l.b16 %v250
    %v1036 = vunpack.c.l.b16 %v251
    %v1037 = vunpack.c.h.b16 %v251
    %v1038 = vunpack.c.l.b16 %v252
    %v1039 = vunpack.c.h.b16 %v252
    %v1040 = vunpack.c.l.b16 %v253
    %v1041 = vunpack.c.l.b16 %v254
    %v1042 = vunpack.c.h.b16 %v254
    %v1043 = vunpack.c.l.b16 %v255
    %v1044 = vunpack.c.h.b16 %v255
    %v1045 = vunpack.c.l.b16 %v256
    %v1046 = vunpack.c.l.b16 %v257
    %v1047 = vunpack.c.h.b16 %v257
    %v1048 = vunpack.c.l.b16 %v258
    %v1049 = vunpack.c.h.b16 %v258
    %v1050 = vunpack.c.l.b16 %v259
    %v1051 = vunpack.c.l.b16 %v260
    %v1052 = vunpack.c.h.b16 %v260
    %v1053 = vunpack.c.l.b16 %v261
    %v1054 = vunpack.c.h.b16 %v261
    %v1055 = vunpack.c.l.b16 %v262
    %v1056 = vunpack.c.l.b16 %v263
    %v1057 = vunpack.c.h.b16 %v263
    %v1058 = vunpack.c.l.b16 %v264
    %v1059 = vunpack.c.h.b16 %v264
    %v1060 = vunpack.c.l.b16 %v265
    %v1061 = vunpack.c.l.b16 %v266
    %v1062 = vunpack.c.h.b16 %v266
    %v1063 = vunpack.c.l.b16 %v267
    %v1064 = vunpack.c.h.b16 %v267
    %v1065 = vunpack.c.l.b16 %v268
    %v1066 = vunpack.c.l.b16 %v269
    %v1067 = vunpack.c.h.b16 %v269
    %v1068 = vunpack.c.l.b16 %v270
    %v1069 = vunpack.c.h.b16 %v270
    %v1070 = vunpack.c.l.b16 %v271
    %v1071 = vunpack.c.l.b16 %v272
    %v1072 = vunpack.c.h.b16 %v272
    %v1073 = vunpack.c.l.b16 %v273
    %v1074 = vunpack.c.h.b16 %v273
    %v1075 = vunpack.c.l.b16 %v274
    %v1076 = vunpack.c.l.b16 %v275
    %v1077 = vunpack.c.h.b16 %v275
    %v1078 = vunpack.c.l.b16 %v276
    %v1079 = vunpack.c.h.b16 %v276
    %v1080 = vunpack.c.l.b16 %v277
    %v1081 = vunpack.c.l.b16 %v278
    %v1082 = vunpack.c.h.b16 %v278
    %v1083 = vunpack.c.l.b16 %v279
    %v1084 = vunpack.c.h.b16 %v279
    %v1085 = vunpack.c.l.b16 %v280
    %v1086 = vunpack.c.l.b16 %v281
    %v1087 = vunpack.c.h.b16 %v281
    %v1088 = vunpack.c.l.b16 %v282
    %v1089 = vunpack.c.h.b16 %v282
    %v1090 = vunpack.c.l.b16 %v283
    %v1091 = vunpack.c.l.b16 %v284
    %v1092 = vunpack.c.h.b16 %v284
    %v1093 = vunpack.c.l.b16 %v285
    %v1094 = vunpack.c.h.b16 %v285
    %v1095 = vunpack.c.l.b16 %v286
    %v1096 = vunpack.c.l.b16 %v287
    %v1097 = vunpack.c.h.b16 %v287
    %v1098 = vunpack.c.l.b16 %v288
    %v1099 = vunpack.c.h.b16 %v288
    %v1100 = vunpack.c.l.b16 %v289
    %v1101 = vunpack.c.l.b16 %v290
    %v1102 = vunpack.c.h.b16 %v290
    %v1103 = vunpack.c.l.b16 %v291
    %v1104 = vunpack.c.h.b16 %v291
    %v1105 = vunpack.c.l.b16 %v292
    %v1106 = vunpack.c.l.b16 %v293
    %v1107 = vunpack.c.h.b16 %v293
    %v1108 = vunpack.c.l.b16 %v294
    %v1109 = vunpack.c.h.b16 %v294
    %v1110 = vunpack.c.l.b16 %v295
    %v1111 = vunpack.c.l.b16 %v296
    %v1112 = vunpack.c.h.b16 %v296
    %v1113 = vunpack.c.l.b16 %v297
    %v1114 = vunpack.c.h.b16 %v297
    %v1115 = vunpack.c.l.b16 %v298
    %v1116 = vunpack.c.l.b16 %v299
    %v1117 = vunpack.c.h.b16 %v299
    %v1118 = vunpack.c.l.b16 %v300
    %v1119 = vunpack.c.h.b16 %v300
    %v1120 = vunpack.c.l.b16 %v301
    %v1121 = vunpack.c.l.b16 %v302
    %v1122 = vunpack.c.h.b16 %v302
    %v1123 = vunpack.c.l.b16 %v303
    %v1124 = vunpack.c.h.b16 %v303
    %v1125 = vunpack.c.l.b16 %v304
    %v1126 = vunpack.c.l.b16 %v305
    %v1127 = vunpack.c.h.b16 %v305
    %v1128 = vunpack.c.l.b16 %v306
    %v1129 = vunpack.c.h.b16 %v306
    %v1130 = vunpack.c.l.b16 %v307
    %v1131 = vunpack.c.l.b16 %v308
    %v1132 = vunpack.c.h.b16 %v308
    %v1133 = vunpack.c.l.b16 %v309
    %v1134 = vunpack.c.h.b16 %v309
    %v1135 = vunpack.c.l.b16 %v310
    %v1136 = vunpack.c.l.b16 %v311
    %v1137 = vunpack.c.h.b16 %v311
    %v1138 = vunpack.c.l.b16 %v312
    %v1139 = vunpack.c.h.b16 %v312
    %v1140 = vunpack.c.l.b16 %v313
    %v1141 = vunpack.c.l.b16 %v314
    %v1142 = vunpack.c.h.b16 %v314
    %v1143 = vunpack.c.l.b16 %v315
    %v1144 = vunpack.c.h.b16 %v315
    %v1145 = vunpack.c.l.b16 %v316
    %v1146 = vunpack.c.l.b16 %v317
    %v1147 = vunpack.c.h.b16 %v317
    %v1148 = vunpack.c.l.b16 %v318
    %v1149 = vunpack.c.h.b16 %v318
    %v1150 = vunpack.c.l.b16 %v319
    %v1151 = vunpack.c.l.b16 %v320
    %v1152 = vunpack.c.h.b16 %v320
    %v1153 = vunpack.c.l.b16 %v321
    %v1154 = vunpack.c.h.b16 %v321
    %v1155 = vunpack.c.l.b16 %v322
    %v1156 = vunpack.c.l.b16 %v323
    %v1157 = vunpack.c.h.b16 %v323
    %v1158 = vunpack.c.l.b16 %v324
    %v1159 = vunpack.c.h.b16 %v324
    %v1160 = vunpack.c.l.b16 %v325
    %v1161 = vpack.c.b16 %v676, %v671
    %v1162 = vpack.c.b16 %v677, %v672
    %v1163 = vpack.c.b16 %v678, %v673
    %v1164 = vpack.c.b16 %v679, %v674
    %v1165 = vpack.c.b16 %v680, %v675
    %v1166 = vpack.c.b16 %v686, %v681
    %v1167 = vpack.c.b16 %v687, %v682
    %v1168 = vpack.c.b16 %v688, %v683
    %v1169 = vpack.c.b16 %v689, %v684
    %v1170 = vpack.c.b16 %v690, %v685
    %v1171 = vpack.c.b16 %v696, %v691
    %v1172 = vpack.c.b16 %v697, %v692
    %v1173 = vpack.c.b16 %v698, %v693
    %v1174 = vpack.c.b16 %v699, %v694
    %v1175 = vpack.c.b16 %v700, %v695
    %v1176 = vpack.c.b16 %v706, %v701
    %v1177 = vpack.c.b16 %v707, %v702
    %v1178 = vpack.c.b16 %v708, %v703
    %v1179 = vpack.c.b16 %v709, %v704
    %v1180 = vpack.c.b16 %v710, %v705
    %v1181 = vpack.c.b16 %v716, %v711
    %v1182 = vpack.c.b16 %v717, %v712
    %v1183 = vpack.c.b16 %v718, %v713
    %v1184 = vpack.c.b16 %v719, %v714
    %v1185 = vpack.c.b16 %v720, %v715
    %v1186 = vpack.c.b16 %v726, %v721
    %v1187 = vpack.c.b16 %v727, %v722
    %v1188 = vpack.c.b16 %v728, %v723
    %v1189 = vpack.c.b16 %v729, %v724
    %v1190 = vpack.c.b16 %v730, %v725
    %v1191 = vpack.c.b16 %v736, %v731
    %v1192 = vpack.c.b16 %v737, %v732
    %v1193 = vpack.c.b16 %v738, %v733
    %v1194 = vpack.c.b16 %v739, %v734
    %v1195 = vpack.c.b16 %v740, %v735
    %v1196 = vpack.c.b16 %v746, %v741
    %v1197 = vpack.c.b16 %v747, %v742
    %v1198 = vpack.c.b16 %v748, %v743
    %v1199 = vpack.c.b16 %v749, %v744
    %v1200 = vpack.c.b16 %v750, %v745
    %v1201 = vpack.c.b16 %v756, %v751
    %v1202 = vpack.c.b16 %v757, %v752
    %v1203 = vpack.c.b16 %v758, %v753
    %v1204 = vpack.c.b16 %v759, %v754
    %v1205 = vpack.c.b16 %v760, %v755
    %v1206 = vpack.c.b16 %v766, %v761
    %v1207 = vpack.c.b16 %v767, %v762
    %v1208 = vpack.c.b16 %v768, %v763
    %v1209 = vpack.c.b16 %v769, %v764
    %v1210 = vpack.c.b16 %v770, %v765
    %v1211 = vpack.c.b16 %v776, %v771
    %v1212 = vpack.c.b16 %v777, %v772
    %v1213 = vpack.c.b16 %v778, %v773
    %v1214 = vpack.c.b16 %v779, %v774
    %v1215 = vpack.c.b16 %v780, %v775
    %v1216 = vpack.c.b16 %v786, %v781
    %v1217 = vpack.c.b16 %v787, %v782
    %v1218 = vpack.c.b16 %v788, %v783
    %v1219 = vpack.c.b16 %v789, %v784
    %v1220 = vpack.c.b16 %v790, %v785
    %v1221 = vpack.c.b16 %v796, %v791
    %v1222 = vpack.c.b16 %v797, %v792
    %v1223 = vpack.c.b16 %v798, %v793
    %v1224 = vpack.c.b16 %v799, %v794
    %v1225 = vpack.c.b16 %v800, %v795
    %v1226 = vpack.c.b16 %v806, %v801
    %v1227 = vpack.c.b16 %v807, %v802
    %v1228 = vpack.c.b16 %v808, %v803
    %v1229 = vpack.c.b16 %v809, %v804
    %v1230 = vpack.c.b16 %v810, %v805
    %v1231 = vpack.c.b16 %v816, %v811
    %v1232 = vpack.c.b16 %v817, %v812
    %v1233 = vpack.c.b16 %v818, %v813
    %v1234 = vpack.c.b16 %v819, %v814
    %v1235 = vpack.c.b16 %v820, %v815
    %v1236 = vpack.c.b16 %v826, %v821
    %v1237 = vpack.c.b16 %v827, %v822
    %v1238 = vpack.c.b16 %v828, %v823
    %v1239 = vpack.c.b16 %v829, %v824
    %v1240 = vpack.c.b16 %v830, %v825
    %v1241 = vpack.c.b16 %v836, %v831
    %v1242 = vpack.c.b16 %v837, %v832
    %v1243 = vpack.c.b16 %v838, %v833
    %v1244 = vpack.c.b16 %v839, %v834
    %v1245 = vpack.c.b16 %v840, %v835
    %v1246 = vpack.c.b16 %v846, %v841
    %v1247 = vpack.c.b16 %v847, %v842
    %v1248 = vpack.c.b16 %v848, %v843
    %v1249 = vpack.c.b16 %v849, %v844
    %v1250 = vpack.c.b16 %v850, %v845
    %v1251 = vpack.c.b16 %v856, %v851
    %v1252 = vpack.c.b16 %v857, %v852
    %v1253 = vpack.c.b16 %v858, %v853
    %v1254 = vpack.c.b16 %v859, %v854
    %v1255 = vpack.c.b16 %v860, %v855
    %v1256 = vpack.c.b16 %v866, %v861
    %v1257 = vpack.c.b16 %v867, %v862
    %v1258 = vpack.c.b16 %v868, %v863
    %v1259 = vpack.c.b16 %v869, %v864
    %v1260 = vpack.c.b16 %v870, %v865
    %v1261 = vpack.c.b16 %v876, %v871
    %v1262 = vpack.c.b16 %v877, %v872
    %v1263 = vpack.c.b16 %v878, %v873
    %v1264 = vpack.c.b16 %v879, %v874
    %v1265 = vpack.c.b16 %v880, %v875
    %v1266 = vpack.c.b16 %v886, %v881
    %v1267 = vpack.c.b16 %v887, %v882
    %v1268 = vpack.c.b16 %v888, %v883
    %v1269 = vpack.c.b16 %v889, %v884
    %v1270 = vpack.c.b16 %v890, %v885
    %v1271 = vpack.c.b16 %v896, %v891
    %v1272 = vpack.c.b16 %v897, %v892
    %v1273 = vpack.c.b16 %v898, %v893
    %v1274 = vpack.c.b16 %v899, %v894
    %v1275 = vpack.c.b16 %v900, %v895
    %v1276 = vpack.c.b16 %v906, %v901
    %v1277 = vpack.c.b16 %v907, %v902
    %v1278 = vpack.c.b16 %v908, %v903
    %v1279 = vpack.c.b16 %v909, %v904
    %v1280 = vpack.c.b16 %v910, %v905
    %v1281 = vpack.c.b16 %v916, %v911
    %v1282 = vpack.c.b16 %v917, %v912
    %v1283 = vpack.c.b16 %v918, %v913
    %v1284 = vpack.c.b16 %v919, %v914
    %v1285 = vpack.c.b16 %v920, %v915
    %v1286 = vpack.c.b16 %v926, %v921
    %v1287 = vpack.c.b16 %v927, %v922
    %v1288 = vpack.c.b16 %v928, %v923
    %v1289 = vpack.c.b16 %v929, %v924
    %v1290 = vpack.c.b16 %v930, %v925
    %v1291 = vpack.c.b16 %v936, %v931
    %v1292 = vpack.c.b16 %v937, %v932
    %v1293 = vpack.c.b16 %v938, %v933
    %v1294 = vpack.c.b16 %v939, %v934
    %v1295 = vpack.c.b16 %v940, %v935
    %v1296 = vpack.c.b16 %v946, %v941
    %v1297 = vpack.c.b16 %v947, %v942
    %v1298 = vpack.c.b16 %v948, %v943
    %v1299 = vpack.c.b16 %v949, %v944
    %v1300 = vpack.c.b16 %v950, %v945
    %v1301 = vpack.c.b16 %v956, %v951
    %v1302 = vpack.c.b16 %v957, %v952
    %v1303 = vpack.c.b16 %v958, %v953
    %v1304 = vpack.c.b16 %v959, %v954
    %v1305 = vpack.c.b16 %v960, %v955
    %v1306 = vpack.c.b16 %v966, %v961
    %v1307 = vpack.c.b16 %v967, %v962
    %v1308 = vpack.c.b16 %v968, %v963
    %v1309 = vpack.c.b16 %v969, %v964
    %v1310 = vpack.c.b16 %v970, %v965
    %v1311 = vpack.c.b16 %v976, %v971
    %v1312 = vpack.c.b16 %v977, %v972
    %v1313 = vpack.c.b16 %v978, %v973
    %v1314 = vpack.c.b16 %v979, %v974
    %v1315 = vpack.c.b16 %v980, %v975
    %v1316 = vpack.c.b16 %v986, %v981
    %v1317 = vpack.c.b16 %v987, %v982
    %v1318 = vpack.c.b16 %v988, %v983
    %v1319 = vpack.c.b16 %v989, %v984
    %v1320 = vpack.c.b16 %v990, %v985
    %v1321 = vpack.c.b16 %v996, %v991
    %v1322 = vpack.c.b16 %v997, %v992
    %v1323 = vpack.c.b16 %v998, %v993
    %v1324 = vpack.c.b16 %v999, %v994
    %v1325 = vpack.c.b16 %v1000, %v995
    %v1326 = vpack.c.b16 %v1006, %v1001
    %v1327 = vpack.c.b16 %v1007, %v1002
    %v1328 = vpack.c.b16 %v1008, %v1003
    %v1329 = vpack.c.b16 %v1009, %v1004
    %v1330 = vpack.c.b16 %v1010, %v1005
    %v1331 = vpack.c.b16 %v1016, %v1011
    %v1332 = vpack.c.b16 %v1017, %v1012
    %v1333 = vpack.c.b16 %v1018, %v1013
    %v1334 = vpack.c.b16 %v1019, %v1014
    %v1335 = vpack.c.b16 %v1020, %v1015
    %v1336 = vpack.c.b16 %v1026, %v1021
    %v1337 = vpack.c.b16 %v1027, %v1022
    %v1338 = vpack.c.b16 %v1028, %v1023
    %v1339 = vpack.c.b16 %v1029, %v1024
    %v1340 = vpack.c.b16 %v1030, %v1025
    %v1341 = vpack.c.b16 %v1036, %v1031
    %v1342 = vpack.c.b16 %v1037, %v1032
    %v1343 = vpack.c.b16 %v1038, %v1033
    %v1344 = vpack.c.b16 %v1039, %v1034
    %v1345 = vpack.c.b16 %v1040, %v1035
    %v1346 = vpack.c.b16 %v1046, %v1041
    %v1347 = vpack.c.b16 %v1047, %v1042
    %v1348 = vpack.c.b16 %v1048, %v1043
    %v1349 = vpack.c.b16 %v1049, %v1044
    %v1350 = vpack.c.b16 %v1050, %v1045
    %v1351 = vpack.c.b16 %v1056, %v1051
    %v1352 = vpack.c.b16 %v1057, %v1052
    %v1353 = vpack.c.b16 %v1058, %v1053
    %v1354 = vpack.c.b16 %v1059, %v1054
    %v1355 = vpack.c.b16 %v1060, %v1055
    %v1356 = vpack.c.b16 %v1066, %v1061
    %v1357 = vpack.c.b16 %v1067, %v1062
    %v1358 = vpack.c.b16 %v1068, %v1063
    %v1359 = vpack.c.b16 %v1069, %v1064
    %v1360 = vpack.c.b16 %v1070, %v1065
    %v1361 = vpack.c.b16 %v1076, %v1071
    %v1362 = vpack.c.b16 %v1077, %v1072
    %v1363 = vpack.c.b16 %v1078, %v1073
    %v1364 = vpack.c.b16 %v1079, %v1074
    %v1365 = vpack.c.b16 %v1080, %v1075
    %v1366 = vpack.c.b16 %v1086, %v1081
    %v1367 = vpack.c.b16 %v1087, %v1082
    %v1368 = vpack.c.b16 %v1088, %v1083
    %v1369 = vpack.c.b16 %v1089, %v1084
    %v1370 = vpack.c.b16 %v1090, %v1085
    %v1371 = vpack.c.b16 %v1096, %v1091
    %v1372 = vpack.c.b16 %v1097, %v1092
    %v1373 = vpack.c.b16 %v1098, %v1093
    %v1374 = vpack.c.b16 %v1099, %v1094
    %v1375 = vpack.c.b16 %v1100, %v1095
    %v1376 = vpack.c.b16 %v1106, %v1101
    %v1377 = vpack.c.b16 %v1107, %v1102
    %v1378 = vpack.c.b16 %v1108, %v1103
    %v1379 = vpack.c.b16 %v1109, %v1104
    %v1380 = vpack.c.b16 %v1110, %v1105
    %v1381 = vpack.c.b16 %v1116, %v1111
    %v1382 = vpack.c.b16 %v1117, %v1112
    %v1383 = vpack.c.b16 %v1118, %v1113
    %v1384 = vpack.c.b16 %v1119, %v1114
    %v1385 = vpack.c.b16 %v1120, %v1115
    %v1386 = vpack.c.b16 %v1126, %v1121
    %v1387 = vpack.c.b16 %v1127, %v1122
    %v1388 = vpack.c.b16 %v1128, %v1123
    %v1389 = vpack.c.b16 %v1129, %v1124
    %v1390 = vpack.c.b16 %v1130, %v1125
    %v1391 = vpack.c.b16 %v1136, %v1131
    %v1392 = vpack.c.b16 %v1137, %v1132
    %v1393 = vpack.c.b16 %v1138, %v1133
    %v1394 = vpack.c.b16 %v1139, %v1134
    %v1395 = vpack.c.b16 %v1140, %v1135
    %v1396 = vpack.c.b16 %v1146, %v1141
    %v1397 = vpack.c.b16 %v1147, %v1142
    %v1398 = vpack.c.b16 %v1148, %v1143
    %v1399 = vpack.c.b16 %v1149, %v1144
    %v1400 = vpack.c.b16 %v1150, %v1145
    %v1401 = vpack.c.b16 %v1156, %v1151
    %v1402 = vpack.c.b16 %v1157, %v1152
    %v1403 = vpack.c.b16 %v1158, %v1153
    %v1404 = vpack.c.b16 %v1159, %v1154
    %v1405 = vpack.c.b16 %v1160, %v1155
    %vm1651 = vcmask 130048
    %v1653 = vsel %vm1651, %v370, 0
    %1655 = vmatprep.subr.bf16.mxu0 %v1162
    %1656 = vmatpush1.bf16.msra.mxu0 %v1161
    %1657 = vmatprep.subr.bf16.mxu0 %v1167
    %1658 = vmatpush1.bf16.msra.mxu0 %v1166
    %1659 = vmatprep.subr.bf16.mxu0 %v1172
    %1660 = vmatpush1.bf16.msra.mxu0 %v1171
    %1661 = vmatprep.subr.bf16.mxu0 %v1177
    %1662 = vmatpush1.bf16.msra.mxu0 %v1176
    %1663 = vmatprep.subr.bf16.mxu0 %v1182
    %1664 = vmatpush1.bf16.msra.mxu0 %v1181
    %1665 = vmatprep.subr.bf16.mxu0 %v1187
    %1666 = vmatpush1.bf16.msra.mxu0 %v1186
    %1667 = vmatprep.subr.bf16.mxu0 %v1192
    %1668 = vmatpush1.bf16.msra.mxu0 %v1191
    %1669 = vmatprep.subr.bf16.mxu0 %v1197
    %1670 = vmatpush1.bf16.msra.mxu0 %v1196
    %1671 = vmatprep.subr.bf16.mxu0 %v1202
    %1672 = vmatpush1.bf16.msra.mxu0 %v1201
    %1673 = vmatprep.subr.bf16.mxu0 %v1207
    %1674 = vmatpush1.bf16.msra.mxu0 %v1206
    %1675 = vmatprep.subr.bf16.mxu0 %v1212
    %1676 = vmatpush1.bf16.msra.mxu0 %v1211
    %1677 = vmatprep.subr.bf16.mxu0 %v1217
    %1678 = vmatpush1.bf16.msra.mxu0 %v1216
    %1679 = vmatprep.subr.bf16.mxu0 %v1222
    %1680 = vmatpush1.bf16.msra.mxu0 %v1221
    %1681 = vmatprep.subr.bf16.mxu0 %v1227
    %1682 = vmatpush1.bf16.msra.mxu0 %v1226
    %1683 = vmatprep.subr.bf16.mxu0 %v1232
    %1684 = vmatpush1.bf16.msra.mxu0 %v1231
    %1685 = vmatprep.subr.bf16.mxu0 %v1237
    %1686 = vmatpush1.bf16.msra.mxu0 %v1236
    %1687 = vmatprep.mubr.bf16.mxu0 %v365
    %1688 = vmatmul.mubr.bf16.gmra.mrb[0].mxu0 %v364
    %v1689 = vpop.f32.mrb[0].mxu0
    %v1690 = vadd.f32 %v331, %v1689
    %v1691 = vpop.f32.mrb[0].mxu0
    %v1692 = vadd.f32 %v335, %v1691
    %v1693 = vpop.f32.mrb[0].mxu0
    %v1694 = vpop.f32.mrb[0].mxu0
    %1695 = vdwg.mxu0
    %1696 = vmatprep.subr.bf16.mxu0 %v1242
    %1697 = vmatpush1.bf16.msra.mxu0 %v1241
    %1698 = vmatprep.subr.bf16.mxu0 %v1247
    %1699 = vmatpush1.bf16.msra.mxu0 %v1246
    %1700 = vmatprep.subr.bf16.mxu0 %v1252
    %1701 = vmatpush1.bf16.msra.mxu0 %v1251
    %1702 = vmatprep.subr.bf16.mxu0 %v1257
    %1703 = vmatpush1.bf16.msra.mxu0 %v1256
    %1704 = vmatprep.subr.bf16.mxu0 %v1262
    %1705 = vmatpush1.bf16.msra.mxu0 %v1261
    %1706 = vmatprep.subr.bf16.mxu0 %v1267
    %1707 = vmatpush1.bf16.msra.mxu0 %v1266
    %1708 = vmatprep.subr.bf16.mxu0 %v1272
    %1709 = vmatpush1.bf16.msra.mxu0 %v1271
    %1710 = vmatprep.subr.bf16.mxu0 %v1277
    %1711 = vmatpush1.bf16.msra.mxu0 %v1276
    %1712 = vmatprep.subr.bf16.mxu0 %v1282
    %1713 = vmatpush1.bf16.msra.mxu0 %v1281
    %1714 = vmatprep.subr.bf16.mxu0 %v1287
    %1715 = vmatpush1.bf16.msra.mxu0 %v1286
    %1716 = vmatprep.subr.bf16.mxu0 %v1292
    %1717 = vmatpush1.bf16.msra.mxu0 %v1291
    %1718 = vmatprep.subr.bf16.mxu0 %v1297
    %1719 = vmatpush1.bf16.msra.mxu0 %v1296
    %1720 = vmatprep.subr.bf16.mxu0 %v1302
    %1721 = vmatpush1.bf16.msra.mxu0 %v1301
    %1722 = vmatprep.subr.bf16.mxu0 %v1307
    %1723 = vmatpush1.bf16.msra.mxu0 %v1306
    %1724 = vmatprep.subr.bf16.mxu0 %v1312
    %1725 = vmatpush1.bf16.msra.mxu0 %v1311
    %1726 = vmatprep.subr.bf16.mxu0 %v1317
    %1727 = vmatpush1.bf16.msra.mxu0 %v1316
    %1728 = vmatprep.mubr.bf16.mxu0 %v367
    %1729 = vmatmul.mubr.bf16.gmra.mrb[0].mxu0 %v366
    %v1730 = vpop.f32.mrb[0].mxu0
    %v1731 = vadd.f32 %v1690, %v1730
    %v1732 = vpop.f32.mrb[0].mxu0
    %v1733 = vadd.f32 %v1692, %v1732
    %v1734 = vpop.f32.mrb[0].mxu0
    %v1735 = vpop.f32.mrb[0].mxu0
    %1736 = vdwg.mxu0
    %1737 = vmatprep.subr.bf16.mxu0 %v1322
    %1738 = vmatpush1.bf16.msra.mxu0 %v1321
    %1739 = vmatprep.subr.bf16.mxu0 %v1327
    %1740 = vmatpush1.bf16.msra.mxu0 %v1326
    %1741 = vmatprep.subr.bf16.mxu0 %v1332
    %1742 = vmatpush1.bf16.msra.mxu0 %v1331
    %1743 = vmatprep.subr.bf16.mxu0 %v1337
    %1744 = vmatpush1.bf16.msra.mxu0 %v1336
    %1745 = vmatprep.subr.bf16.mxu0 %v1342
    %1746 = vmatpush1.bf16.msra.mxu0 %v1341
    %1747 = vmatprep.subr.bf16.mxu0 %v1347
    %1748 = vmatpush1.bf16.msra.mxu0 %v1346
    %1749 = vmatprep.subr.bf16.mxu0 %v1352
    %1750 = vmatpush1.bf16.msra.mxu0 %v1351
    %1751 = vmatprep.subr.bf16.mxu0 %v1357
    %1752 = vmatpush1.bf16.msra.mxu0 %v1356
    %1753 = vmatprep.subr.bf16.mxu0 %v1362
    %1754 = vmatpush1.bf16.msra.mxu0 %v1361
    %1755 = vmatprep.subr.bf16.mxu0 %v1367
    %1756 = vmatpush1.bf16.msra.mxu0 %v1366
    %1757 = vmatprep.subr.bf16.mxu0 %v1372
    %1758 = vmatpush1.bf16.msra.mxu0 %v1371
    %1759 = vmatprep.subr.bf16.mxu0 %v1377
    %1760 = vmatpush1.bf16.msra.mxu0 %v1376
    %1761 = vmatprep.subr.bf16.mxu0 %v1382
    %1762 = vmatpush1.bf16.msra.mxu0 %v1381
    %1763 = vmatprep.subr.bf16.mxu0 %v1387
    %1764 = vmatpush1.bf16.msra.mxu0 %v1386
    %1765 = vmatprep.subr.bf16.mxu0 %v1392
    %1766 = vmatpush1.bf16.msra.mxu0 %v1391
    %1767 = vmatprep.subr.bf16.mxu0 %v1397
    %1768 = vmatpush1.bf16.msra.mxu0 %v1396
    %1769 = vmatprep.mubr.bf16.mxu0 %v369
    %1770 = vmatmul.mubr.bf16.gmra.mrb[0].mxu0 %v368
    %v1771 = vpop.f32.mrb[0].mxu0
    %v1772 = vadd.f32 %v1731, %v1771
    %v1773 = vpop.f32.mrb[0].mxu0
    %v1774 = vadd.f32 %v1733, %v1773
    %v1775 = vpop.f32.mrb[0].mxu0
    %v1776 = vpop.f32.mrb[0].mxu0
    %1777 = vdwg.mxu0
    %1778 = vmatprep.subr.bf16.mxu0 %v1402
    %1779 = vmatpush1.bf16.msra.mxu0 %v1401
    %1780 = vmatprep.subr.bf16.mxu0 0
    %1781 = vmatpush1.bf16.msra.mxu0 0
    %1782 = vmatprep.subr.bf16.mxu0 0
    %1783 = vmatpush1.bf16.msra.mxu0 0
    %1784 = vmatprep.subr.bf16.mxu0 0
    %1785 = vmatpush1.bf16.msra.mxu0 0
    %1786 = vmatprep.subr.bf16.mxu0 0
    %1787 = vmatpush1.bf16.msra.mxu0 0
    %1788 = vmatprep.subr.bf16.mxu0 0
    %1789 = vmatpush1.bf16.msra.mxu0 0
    %1790 = vmatprep.subr.bf16.mxu0 0
    %1791 = vmatpush1.bf16.msra.mxu0 0
    %1792 = vmatprep.subr.bf16.mxu0 0
    %1793 = vmatpush1.bf16.msra.mxu0 0
    %1794 = vmatprep.subr.bf16.mxu0 0
    %1795 = vmatpush1.bf16.msra.mxu0 0
    %1796 = vmatprep.subr.bf16.mxu0 0
    %1797 = vmatpush1.bf16.msra.mxu0 0
    %1798 = vmatprep.subr.bf16.mxu0 0
    %1799 = vmatpush1.bf16.msra.mxu0 0
    %1800 = vmatprep.subr.bf16.mxu0 0
    %1801 = vmatpush1.bf16.msra.mxu0 0
    %1802 = vmatprep.subr.bf16.mxu0 0
    %1803 = vmatpush1.bf16.msra.mxu0 0
    %1804 = vmatprep.subr.bf16.mxu0 0
    %1805 = vmatpush1.bf16.msra.mxu0 0
    %1806 = vmatprep.subr.bf16.mxu0 0
    %1807 = vmatpush1.bf16.msra.mxu0 0
    %1808 = vmatprep.subr.bf16.mxu0 0
    %1809 = vmatpush1.bf16.msra.mxu0 0
    %1810 = vmatprep.mubr.bf16.mxu0 0
    %1811 = vmatmul.mubr.bf16.gmra.mrb[0].mxu0 %v1653
    %v1812 = vpop.f32.mrb[0].mxu0
    %v1813 = vadd.f32 %v1772, %v1812
    %v1814 = vpop.f32.mrb[0].mxu0
    %v1815 = vadd.f32 %v1774, %v1814
    %v1816 = vpop.f32.mrb[0].mxu0
    %v1817 = vpop.f32.mrb[0].mxu0
    %1818 = vdwg.mxu0
    %1819 = vmatprep.subr.bf16.mxu0 %v1164
    %1820 = vmatpush1.bf16.msra.mxu0 %v1163
    %1821 = vmatprep.subr.bf16.mxu0 %v1169
    %1822 = vmatpush1.bf16.msra.mxu0 %v1168
    %1823 = vmatprep.subr.bf16.mxu0 %v1174
    %1824 = vmatpush1.bf16.msra.mxu0 %v1173
    %1825 = vmatprep.subr.bf16.mxu0 %v1179
    %1826 = vmatpush1.bf16.msra.mxu0 %v1178
    %1827 = vmatprep.subr.bf16.mxu0 %v1184
    %1828 = vmatpush1.bf16.msra.mxu0 %v1183
    %1829 = vmatprep.subr.bf16.mxu0 %v1189
    %1830 = vmatpush1.bf16.msra.mxu0 %v1188
    %1831 = vmatprep.subr.bf16.mxu0 %v1194
    %1832 = vmatpush1.bf16.msra.mxu0 %v1193
    %1833 = vmatprep.subr.bf16.mxu0 %v1199
    %1834 = vmatpush1.bf16.msra.mxu0 %v1198
    %1835 = vmatprep.subr.bf16.mxu0 %v1204
    %1836 = vmatpush1.bf16.msra.mxu0 %v1203
    %1837 = vmatprep.subr.bf16.mxu0 %v1209
    %1838 = vmatpush1.bf16.msra.mxu0 %v1208
    %1839 = vmatprep.subr.bf16.mxu0 %v1214
    %1840 = vmatpush1.bf16.msra.mxu0 %v1213
    %1841 = vmatprep.subr.bf16.mxu0 %v1219
    %1842 = vmatpush1.bf16.msra.mxu0 %v1218
    %1843 = vmatprep.subr.bf16.mxu0 %v1224
    %1844 = vmatpush1.bf16.msra.mxu0 %v1223
    %1845 = vmatprep.subr.bf16.mxu0 %v1229
    %1846 = vmatpush1.bf16.msra.mxu0 %v1228
    %1847 = vmatprep.subr.bf16.mxu0 %v1234
    %1848 = vmatpush1.bf16.msra.mxu0 %v1233
    %1849 = vmatprep.subr.bf16.mxu0 %v1239
    %1850 = vmatpush1.bf16.msra.mxu0 %v1238
    %1851 = vmatprep.mubr.bf16.mxu0 %v365
    %1852 = vmatmul.mubr.bf16.gmra.mrb[0].mxu0 %v364
    %v1853 = vpop.f32.mrb[0].mxu0
    %v1854 = vadd.f32 %v339, %v1853
    %v1855 = vpop.f32.mrb[0].mxu0
    %v1856 = vadd.f32 %v343, %v1855
    %v1857 = vpop.f32.mrb[0].mxu0
    %v1858 = vpop.f32.mrb[0].mxu0
    %1859 = vdwg.mxu0
    %1860 = vmatprep.subr.bf16.mxu0 %v1244
    %1861 = vmatpush1.bf16.msra.mxu0 %v1243
    %1862 = vmatprep.subr.bf16.mxu0 %v1249
    %1863 = vmatpush1.bf16.msra.mxu0 %v1248
    %1864 = vmatprep.subr.bf16.mxu0 %v1254
    %1865 = vmatpush1.bf16.msra.mxu0 %v1253
    %1866 = vmatprep.subr.bf16.mxu0 %v1259
    %1867 = vmatpush1.bf16.msra.mxu0 %v1258
    %1868 = vmatprep.subr.bf16.mxu0 %v1264
    %1869 = vmatpush1.bf16.msra.mxu0 %v1263
    %1870 = vmatprep.subr.bf16.mxu0 %v1269
    %1871 = vmatpush1.bf16.msra.mxu0 %v1268
    %1872 = vmatprep.subr.bf16.mxu0 %v1274
    %1873 = vmatpush1.bf16.msra.mxu0 %v1273
    %1874 = vmatprep.subr.bf16.mxu0 %v1279
    %1875 = vmatpush1.bf16.msra.mxu0 %v1278
    %1876 = vmatprep.subr.bf16.mxu0 %v1284
    %1877 = vmatpush1.bf16.msra.mxu0 %v1283
    %1878 = vmatprep.subr.bf16.mxu0 %v1289
    %1879 = vmatpush1.bf16.msra.mxu0 %v1288
    %1880 = vmatprep.subr.bf16.mxu0 %v1294
    %1881 = vmatpush1.bf16.msra.mxu0 %v1293
    %1882 = vmatprep.subr.bf16.mxu0 %v1299
    %1883 = vmatpush1.bf16.msra.mxu0 %v1298
    %1884 = vmatprep.subr.bf16.mxu0 %v1304
    %1885 = vmatpush1.bf16.msra.mxu0 %v1303
    %1886 = vmatprep.subr.bf16.mxu0 %v1309
    %1887 = vmatpush1.bf16.msra.mxu0 %v1308
    %1888 = vmatprep.subr.bf16.mxu0 %v1314
    %1889 = vmatpush1.bf16.msra.mxu0 %v1313
    %1890 = vmatprep.subr.bf16.mxu0 %v1319
    %1891 = vmatpush1.bf16.msra.mxu0 %v1318
    %1892 = vmatprep.mubr.bf16.mxu0 %v367
    %1893 = vmatmul.mubr.bf16.gmra.mrb[0].mxu0 %v366
    %v1894 = vpop.f32.mrb[0].mxu0
    %v1895 = vadd.f32 %v1854, %v1894
    %v1896 = vpop.f32.mrb[0].mxu0
    %v1897 = vadd.f32 %v1856, %v1896
    %v1898 = vpop.f32.mrb[0].mxu0
    %v1899 = vpop.f32.mrb[0].mxu0
    %1900 = vdwg.mxu0
    %1901 = vmatprep.subr.bf16.mxu0 %v1324
    %1902 = vmatpush1.bf16.msra.mxu0 %v1323
    %1903 = vmatprep.subr.bf16.mxu0 %v1329
    %1904 = vmatpush1.bf16.msra.mxu0 %v1328
    %1905 = vmatprep.subr.bf16.mxu0 %v1334
    %1906 = vmatpush1.bf16.msra.mxu0 %v1333
    %1907 = vmatprep.subr.bf16.mxu0 %v1339
    %1908 = vmatpush1.bf16.msra.mxu0 %v1338
    %1909 = vmatprep.subr.bf16.mxu0 %v1344
    %1910 = vmatpush1.bf16.msra.mxu0 %v1343
    %1911 = vmatprep.subr.bf16.mxu0 %v1349
    %1912 = vmatpush1.bf16.msra.mxu0 %v1348
    %1913 = vmatprep.subr.bf16.mxu0 %v1354
    %1914 = vmatpush1.bf16.msra.mxu0 %v1353
    %1915 = vmatprep.subr.bf16.mxu0 %v1359
    %1916 = vmatpush1.bf16.msra.mxu0 %v1358
    %1917 = vmatprep.subr.bf16.mxu0 %v1364
    %1918 = vmatpush1.bf16.msra.mxu0 %v1363
    %1919 = vmatprep.subr.bf16.mxu0 %v1369
    %1920 = vmatpush1.bf16.msra.mxu0 %v1368
    %1921 = vmatprep.subr.bf16.mxu0 %v1374
    %1922 = vmatpush1.bf16.msra.mxu0 %v1373
    %1923 = vmatprep.subr.bf16.mxu0 %v1379
    %1924 = vmatpush1.bf16.msra.mxu0 %v1378
    %1925 = vmatprep.subr.bf16.mxu0 %v1384
    %1926 = vmatpush1.bf16.msra.mxu0 %v1383
    %1927 = vmatprep.subr.bf16.mxu0 %v1389
    %1928 = vmatpush1.bf16.msra.mxu0 %v1388
    %1929 = vmatprep.subr.bf16.mxu0 %v1394
    %1930 = vmatpush1.bf16.msra.mxu0 %v1393
    %1931 = vmatprep.subr.bf16.mxu0 %v1399
    %1932 = vmatpush1.bf16.msra.mxu0 %v1398
    %1933 = vmatprep.mubr.bf16.mxu0 %v369
    %1934 = vmatmul.mubr.bf16.gmra.mrb[0].mxu0 %v368
    %v1935 = vpop.f32.mrb[0].mxu0
    %v1936 = vadd.f32 %v1895, %v1935
    %v1937 = vpop.f32.mrb[0].mxu0
    %v1938 = vadd.f32 %v1897, %v1937
    %v1939 = vpop.f32.mrb[0].mxu0
    %v1940 = vpop.f32.mrb[0].mxu0
    %1941 = vdwg.mxu0
    %1942 = vmatprep.subr.bf16.mxu0 %v1404
    %1943 = vmatpush1.bf16.msra.mxu0 %v1403
    %1944 = vmatprep.subr.bf16.mxu0 0
    %1945 = vmatpush1.bf16.msra.mxu0 0
    %1946 = vmatprep.subr.bf16.mxu0 0
    %1947 = vmatpush1.bf16.msra.mxu0 0
    %1948 = vmatprep.subr.bf16.mxu0 0
    %1949 = vmatpush1.bf16.msra.mxu0 0
    %1950 = vmatprep.subr.bf16.mxu0 0
    %1951 = vmatpush1.bf16.msra.mxu0 0
    %1952 = vmatprep.subr.bf16.mxu0 0
    %1953 = vmatpush1.bf16.msra.mxu0 0
    %1954 = vmatprep.subr.bf16.mxu0 0
    %1955 = vmatpush1.bf16.msra.mxu0 0
    %1956 = vmatprep.subr.bf16.mxu0 0
    %1957 = vmatpush1.bf16.msra.mxu0 0
    %1958 = vmatprep.subr.bf16.mxu0 0
    %1959 = vmatpush1.bf16.msra.mxu0 0
    %1960 = vmatprep.subr.bf16.mxu0 0
    %1961 = vmatpush1.bf16.msra.mxu0 0
    %1962 = vmatprep.subr.bf16.mxu0 0
    %1963 = vmatpush1.bf16.msra.mxu0 0
    %1964 = vmatprep.subr.bf16.mxu0 0
    %1965 = vmatpush1.bf16.msra.mxu0 0
    %1966 = vmatprep.subr.bf16.mxu0 0
    %1967 = vmatpush1.bf16.msra.mxu0 0
    %1968 = vmatprep.subr.bf16.mxu0 0
    %1969 = vmatpush1.bf16.msra.mxu0 0
    %1970 = vmatprep.subr.bf16.mxu0 0
    %1971 = vmatpush1.bf16.msra.mxu0 0
    %1972 = vmatprep.subr.bf16.mxu0 0
    %1973 = vmatpush1.bf16.msra.mxu0 0
    %1974 = vmatprep.mubr.bf16.mxu0 0
    %1975 = vmatmul.mubr.bf16.gmra.mrb[0].mxu0 %v1653
    %v1976 = vpop.f32.mrb[0].mxu0
    %v1977 = vadd.f32 %v1936, %v1976
    %v1978 = vpop.f32.mrb[0].mxu0
    %v1979 = vadd.f32 %v1938, %v1978
    %v1980 = vpop.f32.mrb[0].mxu0
    %v1981 = vpop.f32.mrb[0].mxu0
    %1982 = vdwg.mxu0
    %1983 = vmatprep.subr.bf16.mxu0 0
    %1984 = vmatpush1.bf16.msra.mxu0 %v1165
    %1985 = vmatprep.subr.bf16.mxu0 0
    %1986 = vmatpush1.bf16.msra.mxu0 %v1170
    %1987 = vmatprep.subr.bf16.mxu0 0
    %1988 = vmatpush1.bf16.msra.mxu0 %v1175
    %1989 = vmatprep.subr.bf16.mxu0 0
    %1990 = vmatpush1.bf16.msra.mxu0 %v1180
    %1991 = vmatprep.subr.bf16.mxu0 0
    %1992 = vmatpush1.bf16.msra.mxu0 %v1185
    %1993 = vmatprep.subr.bf16.mxu0 0
    %1994 = vmatpush1.bf16.msra.mxu0 %v1190
    %1995 = vmatprep.subr.bf16.mxu0 0
    %1996 = vmatpush1.bf16.msra.mxu0 %v1195
    %1997 = vmatprep.subr.bf16.mxu0 0
    %1998 = vmatpush1.bf16.msra.mxu0 %v1200
    %1999 = vmatprep.subr.bf16.mxu0 0
    %2000 = vmatpush1.bf16.msra.mxu0 %v1205
    %2001 = vmatprep.subr.bf16.mxu0 0
    %2002 = vmatpush1.bf16.msra.mxu0 %v1210
    %2003 = vmatprep.subr.bf16.mxu0 0
    %2004 = vmatpush1.bf16.msra.mxu0 %v1215
    %2005 = vmatprep.subr.bf16.mxu0 0
    %2006 = vmatpush1.bf16.msra.mxu0 %v1220
    %2007 = vmatprep.subr.bf16.mxu0 0
    %2008 = vmatpush1.bf16.msra.mxu0 %v1225
    %2009 = vmatprep.subr.bf16.mxu0 0
    %2010 = vmatpush1.bf16.msra.mxu0 %v1230
    %2011 = vmatprep.subr.bf16.mxu0 0
    %2012 = vmatpush1.bf16.msra.mxu0 %v1235
    %2013 = vmatprep.subr.bf16.mxu0 0
    %2014 = vmatpush1.bf16.msra.mxu0 %v1240
    %2015 = vmatprep.mubr.bf16.mxu0 %v365
    %2016 = vmatmul.mubr.bf16.gmra.mrb[0].mxu0 %v364
    %v2017 = vpop.f32.mrb[0].mxu0
    %v2018 = vadd.f32 %v347, %v2017
    %v2019 = vpop.f32.mrb[0].mxu0
    %v2020 = vpop.f32.mrb[0].mxu0
    %v2021 = vpop.f32.mrb[0].mxu0
    %2022 = vdwg.mxu0
    %2023 = vmatprep.subr.bf16.mxu0 0
    %2024 = vmatpush1.bf16.msra.mxu0 %v1245
    %2025 = vmatprep.subr.bf16.mxu0 0
    %2026 = vmatpush1.bf16.msra.mxu0 %v1250
    %2027 = vmatprep.subr.bf16.mxu0 0
    %2028 = vmatpush1.bf16.msra.mxu0 %v1255
    %2029 = vmatprep.subr.bf16.mxu0 0
    %2030 = vmatpush1.bf16.msra.mxu0 %v1260
    %2031 = vmatprep.subr.bf16.mxu0 0
    %2032 = vmatpush1.bf16.msra.mxu0 %v1265
    %2033 = vmatprep.subr.bf16.mxu0 0
    %2034 = vmatpush1.bf16.msra.mxu0 %v1270
    %2035 = vmatprep.subr.bf16.mxu0 0
    %2036 = vmatpush1.bf16.msra.mxu0 %v1275
    %2037 = vmatprep.subr.bf16.mxu0 0
    %2038 = vmatpush1.bf16.msra.mxu0 %v1280
    %2039 = vmatprep.subr.bf16.mxu0 0
    %2040 = vmatpush1.bf16.msra.mxu0 %v1285
    %2041 = vmatprep.subr.bf16.mxu0 0
    %2042 = vmatpush1.bf16.msra.mxu0 %v1290
    %2043 = vmatprep.subr.bf16.mxu0 0
    %2044 = vmatpush1.bf16.msra.mxu0 %v1295
    %2045 = vmatprep.subr.bf16.mxu0 0
    %2046 = vmatpush1.bf16.msra.mxu0 %v1300
    %2047 = vmatprep.subr.bf16.mxu0 0
    %2048 = vmatpush1.bf16.msra.mxu0 %v1305
    %2049 = vmatprep.subr.bf16.mxu0 0
    %2050 = vmatpush1.bf16.msra.mxu0 %v1310
    %2051 = vmatprep.subr.bf16.mxu0 0
    %2052 = vmatpush1.bf16.msra.mxu0 %v1315
    %2053 = vmatprep.subr.bf16.mxu0 0
    %2054 = vmatpush1.bf16.msra.mxu0 %v1320
    %2055 = vmatprep.mubr.bf16.mxu0 %v367
    %2056 = vmatmul.mubr.bf16.gmra.mrb[0].mxu0 %v366
    %v2057 = vpop.f32.mrb[0].mxu0
    %v2058 = vadd.f32 %v2018, %v2057
    %v2059 = vpop.f32.mrb[0].mxu0
    %v2060 = vpop.f32.mrb[0].mxu0
    %v2061 = vpop.f32.mrb[0].mxu0
    %2062 = vdwg.mxu0
    %2063 = vmatprep.subr.bf16.mxu0 0
    %2064 = vmatpush1.bf16.msra.mxu0 %v1325
    %2065 = vmatprep.subr.bf16.mxu0 0
    %2066 = vmatpush1.bf16.msra.mxu0 %v1330
    %2067 = vmatprep.subr.bf16.mxu0 0
    %2068 = vmatpush1.bf16.msra.mxu0 %v1335
    %2069 = vmatprep.subr.bf16.mxu0 0
    %2070 = vmatpush1.bf16.msra.mxu0 %v1340
    %2071 = vmatprep.subr.bf16.mxu0 0
    %2072 = vmatpush1.bf16.msra.mxu0 %v1345
    %2073 = vmatprep.subr.bf16.mxu0 0
    %2074 = vmatpush1.bf16.msra.mxu0 %v1350
    %2075 = vmatprep.subr.bf16.mxu0 0
    %2076 = vmatpush1.bf16.msra.mxu0 %v1355
    %2077 = vmatprep.subr.bf16.mxu0 0
    %2078 = vmatpush1.bf16.msra.mxu0 %v1360
    %2079 = vmatprep.subr.bf16.mxu0 0
    %2080 = vmatpush1.bf16.msra.mxu0 %v1365
    %2081 = vmatprep.subr.bf16.mxu0 0
    %2082 = vmatpush1.bf16.msra.mxu0 %v1370
    %2083 = vmatprep.subr.bf16.mxu0 0
    %2084 = vmatpush1.bf16.msra.mxu0 %v1375
    %2085 = vmatprep.subr.bf16.mxu0 0
    %2086 = vmatpush1.bf16.msra.mxu0 %v1380
    %2087 = vmatprep.subr.bf16.mxu0 0
    %2088 = vmatpush1.bf16.msra.mxu0 %v1385
    %2089 = vmatprep.subr.bf16.mxu0 0
    %2090 = vmatpush1.bf16.msra.mxu0 %v1390
    %2091 = vmatprep.subr.bf16.mxu0 0
    %2092 = vmatpush1.bf16.msra.mxu0 %v1395
    %2093 = vmatprep.subr.bf16.mxu0 0
    %2094 = vmatpush1.bf16.msra.mxu0 %v1400
    %2095 = vmatprep.mubr.bf16.mxu0 %v369
    %2096 = vmatmul.mubr.bf16.gmra.mrb[0].mxu0 %v368
    %v2097 = vpop.f32.mrb[0].mxu0
    %v2098 = vadd.f32 %v2058, %v2097
    %v2099 = vpop.f32.mrb[0].mxu0
    %v2100 = vpop.f32.mrb[0].mxu0
    %v2101 = vpop.f32.mrb[0].mxu0
    %2102 = vdwg.mxu0
    %2103 = vmatprep.subr.bf16.mxu0 0
    %2104 = vmatpush1.bf16.msra.mxu0 %v1405
    %2105 = vmatprep.subr.bf16.mxu0 0
    %2106 = vmatpush1.bf16.msra.mxu0 0
    %2107 = vmatprep.subr.bf16.mxu0 0
    %2108 = vmatpush1.bf16.msra.mxu0 0
    %2109 = vmatprep.subr.bf16.mxu0 0
    %2110 = vmatpush1.bf16.msra.mxu0 0
    %2111 = vmatprep.subr.bf16.mxu0 0
    %2112 = vmatpush1.bf16.msra.mxu0 0
    %2113 = vmatprep.subr.bf16.mxu0 0
    %2114 = vmatpush1.bf16.msra.mxu0 0
    %2115 = vmatprep.subr.bf16.mxu0 0
    %2116 = vmatpush1.bf16.msra.mxu0 0
    %2117 = vmatprep.subr.bf16.mxu0 0
    %2118 = vmatpush1.bf16.msra.mxu0 0
    %2119 = vmatprep.subr.bf16.mxu0 0
    %2120 = vmatpush1.bf16.msra.mxu0 0
    %2121 = vmatprep.subr.bf16.mxu0 0
    %2122 = vmatpush1.bf16.msra.mxu0 0
    %2123 = vmatprep.subr.bf16.mxu0 0
    %2124 = vmatpush1.bf16.msra.mxu0 0
    %2125 = vmatprep.subr.bf16.mxu0 0
    %2126 = vmatpush1.bf16.msra.mxu0 0
    %2127 = vmatprep.subr.bf16.mxu0 0
    %2128 = vmatpush1.bf16.msra.mxu0 0
    %2129 = vmatprep.subr.bf16.mxu0 0
    %2130 = vmatpush1.bf16.msra.mxu0 0
    %2131 = vmatprep.subr.bf16.mxu0 0
    %2132 = vmatpush1.bf16.msra.mxu0 0
    %2133 = vmatprep.subr.bf16.mxu0 0
    %2134 = vmatpush1.bf16.msra.mxu0 0
    %2135 = vmatprep.mubr.bf16.mxu0 0
    %2136 = vmatmul.mubr.bf16.gmra.mrb[0].mxu0 %v1653
    %v2137 = vpop.f32.mrb[0].mxu0
    %v2138 = vadd.f32 %v2098, %v2137
    %v2139 = vpop.f32.mrb[0].mxu0
    %v2140 = vpop.f32.mrb[0].mxu0
    %v2141 = vpop.f32.mrb[0].mxu0
    %2142 = vdwg.mxu0
    %v2143 = vmax.f32 %v1813, 0.0
    %v2144 = vmax.f32 %v1815, 0.0
    %v2145 = vmax.f32 %v1977, 0.0
    %v2146 = vmax.f32 %v1979, 0.0
    %v2147 = vmax.f32 %v2138, 0.0
    %v2148 = vpack.c.bf16 %v2143, %v2143
    %v2149 = vpack.c.bf16 %v2144, %v2144
    %v2150 = vpack.c.bf16 %v2145, %v2145
    %v2151 = vpack.c.bf16 %v2146, %v2146
    %v2152 = vpack.c.bf16 %v2147, %v2147
    %v2153 = vld [vmem:[%s3] sm:$0xff]
    %v2154 = vld [vmem:[%s3 + $0x8] sm:$0xff]
    %v2155 = vld [vmem:[%s3 + $0x10] sm:$0xff]
    %v2156 = vld [vmem:[%s3 + $0x18] sm:$0xff]
    %v2157 = vld [vmem:[%s3 + $0x20] sm:$0xff]
    %v2158 = vld [vmem:[%s3 + $0x28] sm:$0xff]
    %v2159 = vld [vmem:[%s3 + $0x30] sm:$0xff]
    %v2160 = vld [vmem:[%s3 + $0x38] sm:$0xff]
    %v2161 = vld [vmem:[%s3 + $0x40] sm:$0xff]
    %v2162 = vld [vmem:[%s3 + $0x48] sm:$0xff]
    %v2163 = vld [vmem:[%s3 + $0x50] sm:$0xff]
    %v2164 = vld [vmem:[%s3 + $0x58] sm:$0xff]
    %v2165 = vld [vmem:[%s3 + $0x60] sm:$0xff]
    %v2166 = vld [vmem:[%s3 + $0x68] sm:$0xff]
    %v2167 = vld [vmem:[%s3 + $0x70] sm:$0xff]
    %v2168 = vld [vmem:[%s3 + $0x78] sm:$0xff]
    %v2169 = vld [vmem:[%s3 + $0x80] sm:$0xff]
    %v2170 = vld [vmem:[%s3 + $0x88] sm:$0xff]
    %v2171 = vld [vmem:[%s3 + $0x90] sm:$0xff]
    %v2172 = vld [vmem:[%s3 + $0x98] sm:$0xff]
    %v2173 = vld [vmem:[%s3 + $0xa0] sm:$0xff]
    %v2174 = vld [vmem:[%s3 + $0xa8] sm:$0xff]
    %v2175 = vld [vmem:[%s3 + $0xb0] sm:$0xff]
    %v2176 = vld [vmem:[%s3 + $0xb8] sm:$0xff]
    %v2177 = vld [vmem:[%s3 + $0xc0] sm:$0xff]
    %v2178 = vld [vmem:[%s3 + $0xc8] sm:$0xff]
    %v2179 = vld [vmem:[%s3 + $0xd0] sm:$0xff]
    %v2180 = vld [vmem:[%s3 + $0xd8] sm:$0xff]
    %v2181 = vld [vmem:[%s3 + $0xe0] sm:$0xff]
    %v2182 = vld [vmem:[%s3 + $0xe8] sm:$0xff]
    %v2183 = vld [vmem:[%s3 + $0xf0] sm:$0xff]
    %v2184 = vld [vmem:[%s3 + $0xf8] sm:$0xff]
    %v2185 = vld [vmem:[%s3 + $0x100] sm:$0xff]
    %v2186 = vld [vmem:[%s3 + $0x108] sm:$0xff]
    %v2187 = vld [vmem:[%s3 + $0x110] sm:$0xff]
    %v2188 = vld [vmem:[%s3 + $0x118] sm:$0xff]
    %v2189 = vld [vmem:[%s3 + $0x120] sm:$0xff]
    %v2190 = vld [vmem:[%s3 + $0x128] sm:$0xff]
    %v2191 = vld [vmem:[%s3 + $0x130] sm:$0xff]
    %v2192 = vld [vmem:[%s3 + $0x138] sm:$0xff]
    %v2193 = vld [vmem:[%s3 + $0x140] sm:$0xff]
    %v2194 = vld [vmem:[%s3 + $0x148] sm:$0xff]
    %v2195 = vld [vmem:[%s3 + $0x150] sm:$0xff]
    %v2196 = vld [vmem:[%s3 + $0x158] sm:$0xff]
    %v2197 = vld [vmem:[%s3 + $0x160] sm:$0xff]
    %v2198 = vld [vmem:[%s3 + $0x168] sm:$0xff]
    %v2199 = vld [vmem:[%s3 + $0x170] sm:$0xff]
    %v2200 = vld [vmem:[%s3 + $0x178] sm:$0xff]
    %v2201 = vld [vmem:[%s3 + $0x180] sm:$0xff]
    %v2202 = vld [vmem:[%s3 + $0x188] sm:$0xff]
    %v2203 = vld [vmem:[%s3 + $0x190] sm:$0xff]
    %v2204 = vld [vmem:[%s3 + $0x198] sm:$0xff]
    %v2205 = vld [vmem:[%s3 + $0x1a0] sm:$0xff]
    %v2206 = vld [vmem:[%s3 + $0x1a8] sm:$0xff]
    %v2207 = vld [vmem:[%s3 + $0x1b0] sm:$0xff]
    %v2208 = vld [vmem:[%s3 + $0x1b8] sm:$0xff]
    %v2209 = vld [vmem:[%s3 + $0x1c0] sm:$0xff]
    %v2210 = vld [vmem:[%s3 + $0x1c8] sm:$0xff]
    %v2211 = vld [vmem:[%s3 + $0x1d0] sm:$0xff]
    %v2212 = vld [vmem:[%s3 + $0x1d8] sm:$0xff]
    %v2213 = vld [vmem:[%s3 + $0x1e0] sm:$0xff]
    %v2214 = vld [vmem:[%s3 + $0x1e8] sm:$0xff]
    %v2215 = vld [vmem:[%s3 + $0x1f0] sm:$0xff]
    %v2216 = vld [vmem:[%s3 + $0x1f8] sm:$0xff]
    %v2217 = vld [vmem:[%s3 + $0x200] sm:$0xff]
    %v2218 = vld [vmem:[%s3 + $0x208] sm:$0xff]
    %v2219 = vld [vmem:[%s3 + $0x210] sm:$0xff]
    %v2220 = vld [vmem:[%s3 + $0x218] sm:$0xff]
    %v2221 = vld [vmem:[%s3 + $0x220] sm:$0x33]
    %v2222 = vld [vmem:[%s4] sm:$0x3]
    %v2224 = vlaneseq
    %v2225 = vshrl.u32 %v2224, 7
    %v2226 = vsub.s32 0, %v2225
    %v2227 = vrot.slane %v2222, %v2226
    %v2228 = vlaneseq
    %v2229 = vshrl.u32 %v2228, 7
    %v2230 = vsub.s32 1, %v2229
    %v2231 = vrot.slane %v2222, %v2230
    %v2303 = vunpack.c.l.b16 %v2153
    %v2304 = vunpack.c.h.b16 %v2153
    %v2305 = vunpack.c.l.b16 %v2154
    %v2306 = vunpack.c.h.b16 %v2154
    %v2307 = vunpack.c.l.b16 %v2155
    %v2308 = vunpack.c.h.b16 %v2155
    %v2309 = vunpack.c.l.b16 %v2156
    %v2310 = vunpack.c.h.b16 %v2156
    %v2311 = vunpack.c.l.b16 %v2157
    %v2312 = vunpack.c.h.b16 %v2157
    %v2313 = vunpack.c.l.b16 %v2158
    %v2314 = vunpack.c.h.b16 %v2158
    %v2315 = vunpack.c.l.b16 %v2159
    %v2316 = vunpack.c.h.b16 %v2159
    %v2317 = vunpack.c.l.b16 %v2160
    %v2318 = vunpack.c.h.b16 %v2160
    %v2319 = vunpack.c.l.b16 %v2161
    %v2320 = vunpack.c.h.b16 %v2161
    %v2321 = vunpack.c.l.b16 %v2162
    %v2322 = vunpack.c.h.b16 %v2162
    %v2323 = vunpack.c.l.b16 %v2163
    %v2324 = vunpack.c.h.b16 %v2163
    %v2325 = vunpack.c.l.b16 %v2164
    %v2326 = vunpack.c.h.b16 %v2164
    %v2327 = vunpack.c.l.b16 %v2165
    %v2328 = vunpack.c.h.b16 %v2165
    %v2329 = vunpack.c.l.b16 %v2166
    %v2330 = vunpack.c.h.b16 %v2166
    %v2331 = vunpack.c.l.b16 %v2167
    %v2332 = vunpack.c.h.b16 %v2167
    %v2333 = vunpack.c.l.b16 %v2168
    %v2334 = vunpack.c.h.b16 %v2168
    %v2335 = vunpack.c.l.b16 %v2169
    %v2336 = vunpack.c.h.b16 %v2169
    %v2337 = vunpack.c.l.b16 %v2170
    %v2338 = vunpack.c.h.b16 %v2170
    %v2339 = vunpack.c.l.b16 %v2171
    %v2340 = vunpack.c.h.b16 %v2171
    %v2341 = vunpack.c.l.b16 %v2172
    %v2342 = vunpack.c.h.b16 %v2172
    %v2343 = vunpack.c.l.b16 %v2173
    %v2344 = vunpack.c.h.b16 %v2173
    %v2345 = vunpack.c.l.b16 %v2174
    %v2346 = vunpack.c.h.b16 %v2174
    %v2347 = vunpack.c.l.b16 %v2175
    %v2348 = vunpack.c.h.b16 %v2175
    %v2349 = vunpack.c.l.b16 %v2176
    %v2350 = vunpack.c.h.b16 %v2176
    %v2351 = vunpack.c.l.b16 %v2177
    %v2352 = vunpack.c.h.b16 %v2177
    %v2353 = vunpack.c.l.b16 %v2178
    %v2354 = vunpack.c.h.b16 %v2178
    %v2355 = vunpack.c.l.b16 %v2179
    %v2356 = vunpack.c.h.b16 %v2179
    %v2357 = vunpack.c.l.b16 %v2180
    %v2358 = vunpack.c.h.b16 %v2180
    %v2359 = vunpack.c.l.b16 %v2181
    %v2360 = vunpack.c.h.b16 %v2181
    %v2361 = vunpack.c.l.b16 %v2182
    %v2362 = vunpack.c.h.b16 %v2182
    %v2363 = vunpack.c.l.b16 %v2183
    %v2364 = vunpack.c.h.b16 %v2183
    %v2365 = vunpack.c.l.b16 %v2184
    %v2366 = vunpack.c.h.b16 %v2184
    %v2367 = vunpack.c.l.b16 %v2185
    %v2368 = vunpack.c.h.b16 %v2185
    %v2369 = vunpack.c.l.b16 %v2186
    %v2370 = vunpack.c.h.b16 %v2186
    %v2371 = vunpack.c.l.b16 %v2187
    %v2372 = vunpack.c.h.b16 %v2187
    %v2373 = vunpack.c.l.b16 %v2188
    %v2374 = vunpack.c.h.b16 %v2188
    %v2375 = vunpack.c.l.b16 %v2189
    %v2376 = vunpack.c.h.b16 %v2189
    %v2377 = vunpack.c.l.b16 %v2190
    %v2378 = vunpack.c.h.b16 %v2190
    %v2379 = vunpack.c.l.b16 %v2191
    %v2380 = vunpack.c.h.b16 %v2191
    %v2381 = vunpack.c.l.b16 %v2192
    %v2382 = vunpack.c.h.b16 %v2192
    %v2383 = vunpack.c.l.b16 %v2193
    %v2384 = vunpack.c.h.b16 %v2193
    %v2385 = vunpack.c.l.b16 %v2194
    %v2386 = vunpack.c.h.b16 %v2194
    %v2387 = vunpack.c.l.b16 %v2195
    %v2388 = vunpack.c.h.b16 %v2195
    %v2389 = vunpack.c.l.b16 %v2196
    %v2390 = vunpack.c.h.b16 %v2196
    %v2391 = vunpack.c.l.b16 %v2197
    %v2392 = vunpack.c.h.b16 %v2197
    %v2393 = vunpack.c.l.b16 %v2198
    %v2394 = vunpack.c.h.b16 %v2198
    %v2395 = vunpack.c.l.b16 %v2199
    %v2396 = vunpack.c.h.b16 %v2199
    %v2397 = vunpack.c.l.b16 %v2200
    %v2398 = vunpack.c.h.b16 %v2200
    %v2399 = vunpack.c.l.b16 %v2201
    %v2400 = vunpack.c.h.b16 %v2201
    %v2401 = vunpack.c.l.b16 %v2202
    %v2402 = vunpack.c.h.b16 %v2202
    %v2403 = vunpack.c.l.b16 %v2203
    %v2404 = vunpack.c.h.b16 %v2203
    %v2405 = vunpack.c.l.b16 %v2204
    %v2406 = vunpack.c.h.b16 %v2204
    %v2407 = vunpack.c.l.b16 %v2205
    %v2408 = vunpack.c.h.b16 %v2205
    %v2409 = vunpack.c.l.b16 %v2206
    %v2410 = vunpack.c.h.b16 %v2206
    %v2411 = vunpack.c.l.b16 %v2207
    %v2412 = vunpack.c.h.b16 %v2207
    %v2413 = vunpack.c.l.b16 %v2208
    %v2414 = vunpack.c.h.b16 %v2208
    %v2415 = vunpack.c.l.b16 %v2209
    %v2416 = vunpack.c.h.b16 %v2209
    %v2417 = vunpack.c.l.b16 %v2210
    %v2418 = vunpack.c.h.b16 %v2210
    %v2419 = vunpack.c.l.b16 %v2211
    %v2420 = vunpack.c.h.b16 %v2211
    %v2421 = vunpack.c.l.b16 %v2212
    %v2422 = vunpack.c.h.b16 %v2212
    %v2423 = vunpack.c.l.b16 %v2213
    %v2424 = vunpack.c.h.b16 %v2213
    %v2425 = vunpack.c.l.b16 %v2214
    %v2426 = vunpack.c.h.b16 %v2214
    %v2427 = vunpack.c.l.b16 %v2215
    %v2428 = vunpack.c.h.b16 %v2215
    %v2429 = vunpack.c.l.b16 %v2216
    %v2430 = vunpack.c.h.b16 %v2216
    %v2431 = vunpack.c.l.b16 %v2217
    %v2432 = vunpack.c.h.b16 %v2217
    %v2433 = vunpack.c.l.b16 %v2218
    %v2434 = vunpack.c.h.b16 %v2218
    %v2435 = vunpack.c.l.b16 %v2219
    %v2436 = vunpack.c.h.b16 %v2219
    %v2437 = vunpack.c.l.b16 %v2220
    %v2438 = vunpack.c.h.b16 %v2220
    %v2439 = vunpack.c.l.b16 %v2221
    %v2440 = vunpack.c.h.b16 %v2221
    %v2441 = vpack.c.b16 %v2305, %v2303
    %v2442 = vpack.c.b16 %v2306, %v2304
    %v2443 = vpack.c.b16 %v2309, %v2307
    %v2444 = vpack.c.b16 %v2310, %v2308
    %v2445 = vpack.c.b16 %v2313, %v2311
    %v2446 = vpack.c.b16 %v2314, %v2312
    %v2447 = vpack.c.b16 %v2317, %v2315
    %v2448 = vpack.c.b16 %v2318, %v2316
    %v2449 = vpack.c.b16 %v2321, %v2319
    %v2450 = vpack.c.b16 %v2322, %v2320
    %v2451 = vpack.c.b16 %v2325, %v2323
    %v2452 = vpack.c.b16 %v2326, %v2324
    %v2453 = vpack.c.b16 %v2329, %v2327
    %v2454 = vpack.c.b16 %v2330, %v2328
    %v2455 = vpack.c.b16 %v2333, %v2331
    %v2456 = vpack.c.b16 %v2334, %v2332
    %v2457 = vpack.c.b16 %v2337, %v2335
    %v2458 = vpack.c.b16 %v2338, %v2336
    %v2459 = vpack.c.b16 %v2341, %v2339
    %v2460 = vpack.c.b16 %v2342, %v2340
    %v2461 = vpack.c.b16 %v2345, %v2343
    %v2462 = vpack.c.b16 %v2346, %v2344
    %v2463 = vpack.c.b16 %v2349, %v2347
    %v2464 = vpack.c.b16 %v2350, %v2348
    %v2465 = vpack.c.b16 %v2353, %v2351
    %v2466 = vpack.c.b16 %v2354, %v2352
    %v2467 = vpack.c.b16 %v2357, %v2355
    %v2468 = vpack.c.b16 %v2358, %v2356
    %v2469 = vpack.c.b16 %v2361, %v2359
    %v2470 = vpack.c.b16 %v2362, %v2360
    %v2471 = vpack.c.b16 %v2365, %v2363
    %v2472 = vpack.c.b16 %v2366, %v2364
    %v2473 = vpack.c.b16 %v2369, %v2367
    %v2474 = vpack.c.b16 %v2370, %v2368
    %v2475 = vpack.c.b16 %v2373, %v2371
    %v2476 = vpack.c.b16 %v2374, %v2372
    %v2477 = vpack.c.b16 %v2377, %v2375
    %v2478 = vpack.c.b16 %v2378, %v2376
    %v2479 = vpack.c.b16 %v2381, %v2379
    %v2480 = vpack.c.b16 %v2382, %v2380
    %v2481 = vpack.c.b16 %v2385, %v2383
    %v2482 = vpack.c.b16 %v2386, %v2384
    %v2483 = vpack.c.b16 %v2389, %v2387
    %v2484 = vpack.c.b16 %v2390, %v2388
    %v2485 = vpack.c.b16 %v2393, %v2391
    %v2486 = vpack.c.b16 %v2394, %v2392
    %v2487 = vpack.c.b16 %v2397, %v2395
    %v2488 = vpack.c.b16 %v2398, %v2396
    %v2489 = vpack.c.b16 %v2401, %v2399
    %v2490 = vpack.c.b16 %v2402, %v2400
    %v2491 = vpack.c.b16 %v2405, %v2403
    %v2492 = vpack.c.b16 %v2406, %v2404
    %v2493 = vpack.c.b16 %v2409, %v2407
    %v2494 = vpack.c.b16 %v2410, %v2408
    %v2495 = vpack.c.b16 %v2413, %v2411
    %v2496 = vpack.c.b16 %v2414, %v2412
    %v2497 = vpack.c.b16 %v2417, %v2415
    %v2498 = vpack.c.b16 %v2418, %v2416
    %v2499 = vpack.c.b16 %v2421, %v2419
    %v2500 = vpack.c.b16 %v2422, %v2420
    %v2501 = vpack.c.b16 %v2425, %v2423
    %v2502 = vpack.c.b16 %v2426, %v2424
    %v2503 = vpack.c.b16 %v2429, %v2427
    %v2504 = vpack.c.b16 %v2430, %v2428
    %v2505 = vpack.c.b16 %v2433, %v2431
    %v2506 = vpack.c.b16 %v2434, %v2432
    %v2507 = vpack.c.b16 %v2437, %v2435
    %v2508 = vpack.c.b16 %v2438, %v2436
    %v2509 = vpack.c.b16 %v2439, %v2439
    %v2510 = vpack.c.b16 %v2440, %v2440
    %vm2579 = vcmask 293888
    %v2581 = vsel %vm2579, %v2152, 0
    %vm2583 = vcmask 1041408
    %v2585 = vsel %vm2583, %v2509, 0
    %v2588 = vsel %vm2583, %v2510, 0
    %2590 = vmatprep.subr.bf16.mxu0 %v2442
    %2591 = vmatpush1.bf16.msra.mxu0 %v2441
    %2592 = vmatprep.subr.bf16.mxu0 %v2444
    %2593 = vmatpush1.bf16.msra.mxu0 %v2443
    %2594 = vmatprep.subr.bf16.mxu0 %v2446
    %2595 = vmatpush1.bf16.msra.mxu0 %v2445
    %2596 = vmatprep.subr.bf16.mxu0 %v2448
    %2597 = vmatpush1.bf16.msra.mxu0 %v2447
    %2598 = vmatprep.subr.bf16.mxu0 %v2450
    %2599 = vmatpush1.bf16.msra.mxu0 %v2449
    %2600 = vmatprep.subr.bf16.mxu0 %v2452
    %2601 = vmatpush1.bf16.msra.mxu0 %v2451
    %2602 = vmatprep.subr.bf16.mxu0 %v2454
    %2603 = vmatpush1.bf16.msra.mxu0 %v2453
    %2604 = vmatprep.subr.bf16.mxu0 %v2456
    %2605 = vmatpush1.bf16.msra.mxu0 %v2455
    %2606 = vmatprep.subr.bf16.mxu0 %v2458
    %2607 = vmatpush1.bf16.msra.mxu0 %v2457
    %2608 = vmatprep.subr.bf16.mxu0 %v2460
    %2609 = vmatpush1.bf16.msra.mxu0 %v2459
    %2610 = vmatprep.subr.bf16.mxu0 %v2462
    %2611 = vmatpush1.bf16.msra.mxu0 %v2461
    %2612 = vmatprep.subr.bf16.mxu0 %v2464
    %2613 = vmatpush1.bf16.msra.mxu0 %v2463
    %2614 = vmatprep.subr.bf16.mxu0 %v2466
    %2615 = vmatpush1.bf16.msra.mxu0 %v2465
    %2616 = vmatprep.subr.bf16.mxu0 %v2468
    %2617 = vmatpush1.bf16.msra.mxu0 %v2467
    %2618 = vmatprep.subr.bf16.mxu0 %v2470
    %2619 = vmatpush1.bf16.msra.mxu0 %v2469
    %2620 = vmatprep.subr.bf16.mxu0 %v2472
    %2621 = vmatpush1.bf16.msra.mxu0 %v2471
    %2622 = vmatprep.mubr.bf16.mxu0 %v2149
    %2623 = vmatmul.mubr.bf16.gmra.mrb[0].mxu0 %v2148
    %v2624 = vpop.f32.mrb[0].mxu0
    %v2625 = vadd.f32 %v2227, %v2624
    %v2626 = vpop.f32.mrb[0].mxu0
    %v2627 = vadd.f32 %v2231, %v2626
    %v2628 = vpop.f32.mrb[0].mxu0
    %v2629 = vpop.f32.mrb[0].mxu0
    %2630 = vdwg.mxu0
    %2631 = vmatprep.subr.bf16.mxu0 %v2474
    %2632 = vmatpush1.bf16.msra.mxu0 %v2473
    %2633 = vmatprep.subr.bf16.mxu0 %v2476
    %2634 = vmatpush1.bf16.msra.mxu0 %v2475
    %2635 = vmatprep.subr.bf16.mxu0 %v2478
    %2636 = vmatpush1.bf16.msra.mxu0 %v2477
    %2637 = vmatprep.subr.bf16.mxu0 %v2480
    %2638 = vmatpush1.bf16.msra.mxu0 %v2479
    %2639 = vmatprep.subr.bf16.mxu0 %v2482
    %2640 = vmatpush1.bf16.msra.mxu0 %v2481
    %2641 = vmatprep.subr.bf16.mxu0 %v2484
    %2642 = vmatpush1.bf16.msra.mxu0 %v2483
    %2643 = vmatprep.subr.bf16.mxu0 %v2486
    %2644 = vmatpush1.bf16.msra.mxu0 %v2485
    %2645 = vmatprep.subr.bf16.mxu0 %v2488
    %2646 = vmatpush1.bf16.msra.mxu0 %v2487
    %2647 = vmatprep.subr.bf16.mxu0 %v2490
    %2648 = vmatpush1.bf16.msra.mxu0 %v2489
    %2649 = vmatprep.subr.bf16.mxu0 %v2492
    %2650 = vmatpush1.bf16.msra.mxu0 %v2491
    %2651 = vmatprep.subr.bf16.mxu0 %v2494
    %2652 = vmatpush1.bf16.msra.mxu0 %v2493
    %2653 = vmatprep.subr.bf16.mxu0 %v2496
    %2654 = vmatpush1.bf16.msra.mxu0 %v2495
    %2655 = vmatprep.subr.bf16.mxu0 %v2498
    %2656 = vmatpush1.bf16.msra.mxu0 %v2497
    %2657 = vmatprep.subr.bf16.mxu0 %v2500
    %2658 = vmatpush1.bf16.msra.mxu0 %v2499
    %2659 = vmatprep.subr.bf16.mxu0 %v2502
    %2660 = vmatpush1.bf16.msra.mxu0 %v2501
    %2661 = vmatprep.subr.bf16.mxu0 %v2504
    %2662 = vmatpush1.bf16.msra.mxu0 %v2503
    %2663 = vmatprep.mubr.bf16.mxu0 %v2151
    %2664 = vmatmul.mubr.bf16.gmra.mrb[0].mxu0 %v2150
    %v2665 = vpop.f32.mrb[0].mxu0
    %v2666 = vadd.f32 %v2625, %v2665
    %v2667 = vpop.f32.mrb[0].mxu0
    %v2668 = vadd.f32 %v2627, %v2667
    %v2669 = vpop.f32.mrb[0].mxu0
    %v2670 = vpop.f32.mrb[0].mxu0
    %2671 = vdwg.mxu0
    %2672 = vmatprep.subr.bf16.mxu0 %v2506
    %2673 = vmatpush1.bf16.msra.mxu0 %v2505
    %2674 = vmatprep.subr.bf16.mxu0 %v2508
    %2675 = vmatpush1.bf16.msra.mxu0 %v2507
    %2676 = vmatprep.subr.bf16.mxu0 %v2588
    %2677 = vmatpush1.bf16.msra.mxu0 %v2585
    %2678 = vmatprep.subr.bf16.mxu0 0
    %2679 = vmatpush1.bf16.msra.mxu0 0
    %2680 = vmatprep.subr.bf16.mxu0 0
    %2681 = vmatpush1.bf16.msra.mxu0 0
    %2682 = vmatprep.subr.bf16.mxu0 0
    %2683 = vmatpush1.bf16.msra.mxu0 0
    %2684 = vmatprep.subr.bf16.mxu0 0
    %2685 = vmatpush1.bf16.msra.mxu0 0
    %2686 = vmatprep.subr.bf16.mxu0 0
    %2687 = vmatpush1.bf16.msra.mxu0 0
    %2688 = vmatprep.subr.bf16.mxu0 0
    %2689 = vmatpush1.bf16.msra.mxu0 0
    %2690 = vmatprep.subr.bf16.mxu0 0
    %2691 = vmatpush1.bf16.msra.mxu0 0
    %2692 = vmatprep.subr.bf16.mxu0 0
    %2693 = vmatpush1.bf16.msra.mxu0 0
    %2694 = vmatprep.subr.bf16.mxu0 0
    %2695 = vmatpush1.bf16.msra.mxu0 0
    %2696 = vmatprep.subr.bf16.mxu0 0
    %2697 = vmatpush1.bf16.msra.mxu0 0
    %2698 = vmatprep.subr.bf16.mxu0 0
    %2699 = vmatpush1.bf16.msra.mxu0 0
    %2700 = vmatprep.subr.bf16.mxu0 0
    %2701 = vmatpush1.bf16.msra.mxu0 0
    %2702 = vmatprep.subr.bf16.mxu0 0
    %2703 = vmatpush1.bf16.msra.mxu0 0
    %2704 = vmatprep.mubr.bf16.mxu0 0
    %2705 = vmatmul.mubr.bf16.gmra.mrb[0].mxu0 %v2581
    %v2706 = vpop.f32.mrb[0].mxu0
    %v2707 = vadd.f32 %v2666, %v2706
    %v2708 = vpop.f32.mrb[0].mxu0
    %v2709 = vadd.f32 %v2668, %v2708
    %v2710 = vpop.f32.mrb[0].mxu0
    %v2711 = vpop.f32.mrb[0].mxu0
    %2712 = vdwg.mxu0
    %v2713 = vmax.f32 %v2707, 0.0
    %v2714 = vmax.f32 %v2709, 0.0
    %v2715 = vpack.c.bf16 %v2713, %v2713
    %v2716 = vpack.c.bf16 %v2714, %v2714
    %v2717 = vld [vmem:[%s5] sm:$0xf]
    %v2718 = vld [vmem:[%s5 + $0x4] sm:$0xf]
    %v2719 = vld [vmem:[%s5 + $0x8] sm:$0xf]
    %v2720 = vld [vmem:[%s5 + $0xc] sm:$0xf]
    %v2721 = vld [vmem:[%s5 + $0x10] sm:$0xf]
    %v2722 = vld [vmem:[%s5 + $0x14] sm:$0xf]
    %v2723 = vld [vmem:[%s5 + $0x18] sm:$0xf]
    %v2724 = vld [vmem:[%s5 + $0x1c] sm:$0xf]
    %v2725 = vld [vmem:[%s5 + $0x20] sm:$0xf]
    %v2726 = vld [vmem:[%s5 + $0x24] sm:$0xf]
    %v2727 = vld [vmem:[%s5 + $0x28] sm:$0xf]
    %v2728 = vld [vmem:[%s5 + $0x2c] sm:$0xf]
    %v2729 = vld [vmem:[%s5 + $0x30] sm:$0xf]
    %v2730 = vld [vmem:[%s5 + $0x34] sm:$0xf]
    %v2731 = vld [vmem:[%s5 + $0x38] sm:$0xf]
    %v2732 = vld [vmem:[%s5 + $0x3c] sm:$0xf]
    %v2733 = vld [vmem:[%s5 + $0x40] sm:$0xf]
    %v2734 = vld [vmem:[%s5 + $0x44] sm:$0xf]
    %v2735 = vld [vmem:[%s5 + $0x48] sm:$0xf]
    %v2736 = vld [vmem:[%s5 + $0x4c] sm:$0xf]
    %v2737 = vld [vmem:[%s5 + $0x50] sm:$0xf]
    %v2738 = vld [vmem:[%s5 + $0x54] sm:$0xf]
    %v2739 = vld [vmem:[%s5 + $0x58] sm:$0xf]
    %v2740 = vld [vmem:[%s5 + $0x5c] sm:$0xf]
    %v2741 = vld [vmem:[%s5 + $0x60] sm:$0xf]
    %v2742 = vld [vmem:[%s5 + $0x64] sm:$0xf]
    %v2743 = vld [vmem:[%s5 + $0x68] sm:$0xf]
    %v2744 = vld [vmem:[%s5 + $0x6c] sm:$0xf]
    %v2745 = vld [vmem:[%s5 + $0x70] sm:$0xf]
    %v2746 = vld [vmem:[%s5 + $0x74] sm:$0xf]
    %v2747 = vld [vmem:[%s5 + $0x78] sm:$0xf]
    %v2748 = vld [vmem:[%s5 + $0x7c] sm:$0x3]
    %v2749 = vld [vmem:[%s6] sm:$0x1]
    %v2751 = vlaneseq
    %v2752 = vshrl.u32 %v2751, 7
    %v2753 = vsub.s32 0, %v2752
    %v2754 = vrot.slane %v2749, %v2753
    %v2788 = vunpack.c.l.b16 %v2717
    %v2789 = vunpack.c.l.b16 %v2718
    %v2790 = vunpack.c.l.b16 %v2719
    %v2791 = vunpack.c.l.b16 %v2720
    %v2792 = vunpack.c.l.b16 %v2721
    %v2793 = vunpack.c.l.b16 %v2722
    %v2794 = vunpack.c.l.b16 %v2723
    %v2795 = vunpack.c.l.b16 %v2724
    %v2796 = vunpack.c.l.b16 %v2725
    %v2797 = vunpack.c.l.b16 %v2726
    %v2798 = vunpack.c.l.b16 %v2727
    %v2799 = vunpack.c.l.b16 %v2728
    %v2800 = vunpack.c.l.b16 %v2729
    %v2801 = vunpack.c.l.b16 %v2730
    %v2802 = vunpack.c.l.b16 %v2731
    %v2803 = vunpack.c.l.b16 %v2732
    %v2804 = vunpack.c.l.b16 %v2733
    %v2805 = vunpack.c.l.b16 %v2734
    %v2806 = vunpack.c.l.b16 %v2735
    %v2807 = vunpack.c.l.b16 %v2736
    %v2808 = vunpack.c.l.b16 %v2737
    %v2809 = vunpack.c.l.b16 %v2738
    %v2810 = vunpack.c.l.b16 %v2739
    %v2811 = vunpack.c.l.b16 %v2740
    %v2812 = vunpack.c.l.b16 %v2741
    %v2813 = vunpack.c.l.b16 %v2742
    %v2814 = vunpack.c.l.b16 %v2743
    %v2815 = vunpack.c.l.b16 %v2744
    %v2816 = vunpack.c.l.b16 %v2745
    %v2817 = vunpack.c.l.b16 %v2746
    %v2818 = vunpack.c.l.b16 %v2747
    %v2819 = vunpack.c.l.b16 %v2748
    %v2820 = vpack.c.b16 %v2789, %v2788
    %v2821 = vpack.c.b16 %v2791, %v2790
    %v2822 = vpack.c.b16 %v2793, %v2792
    %v2823 = vpack.c.b16 %v2795, %v2794
    %v2824 = vpack.c.b16 %v2797, %v2796
    %v2825 = vpack.c.b16 %v2799, %v2798
    %v2826 = vpack.c.b16 %v2801, %v2800
    %v2827 = vpack.c.b16 %v2803, %v2802
    %v2828 = vpack.c.b16 %v2805, %v2804
    %v2829 = vpack.c.b16 %v2807, %v2806
    %v2830 = vpack.c.b16 %v2809, %v2808
    %v2831 = vpack.c.b16 %v2811, %v2810
    %v2832 = vpack.c.b16 %v2813, %v2812
    %v2833 = vpack.c.b16 %v2815, %v2814
    %v2834 = vpack.c.b16 %v2817, %v2816
    %v2835 = vpack.c.b16 %v2819, %v2818
    %vm2851 = vcmask 1014784
    %v2853 = vsel %vm2851, %v2716, 0
    %vm2855 = vcmask 1045504
    %v2857 = vsel %vm2855, %v2835, 0
    %2859 = vmatprep.subr.bf16.mxu0 0
    %2860 = vmatpush1.bf16.msra.mxu0 %v2820
    %2861 = vmatprep.subr.bf16.mxu0 0
    %2862 = vmatpush1.bf16.msra.mxu0 %v2821
    %2863 = vmatprep.subr.bf16.mxu0 0
    %2864 = vmatpush1.bf16.msra.mxu0 %v2822
    %2865 = vmatprep.subr.bf16.mxu0 0
    %2866 = vmatpush1.bf16.msra.mxu0 %v2823
    %2867 = vmatprep.subr.bf16.mxu0 0
    %2868 = vmatpush1.bf16.msra.mxu0 %v2824
    %2869 = vmatprep.subr.bf16.mxu0 0
    %2870 = vmatpush1.bf16.msra.mxu0 %v2825
    %2871 = vmatprep.subr.bf16.mxu0 0
    %2872 = vmatpush1.bf16.msra.mxu0 %v2826
    %2873 = vmatprep.subr.bf16.mxu0 0
    %2874 = vmatpush1.bf16.msra.mxu0 %v2827
    %2875 = vmatprep.subr.bf16.mxu0 0
    %2876 = vmatpush1.bf16.msra.mxu0 %v2828
    %2877 = vmatprep.subr.bf16.mxu0 0
    %2878 = vmatpush1.bf16.msra.mxu0 %v2829
    %2879 = vmatprep.subr.bf16.mxu0 0
    %2880 = vmatpush1.bf16.msra.mxu0 %v2830
    %2881 = vmatprep.subr.bf16.mxu0 0
    %2882 = vmatpush1.bf16.msra.mxu0 %v2831
    %2883 = vmatprep.subr.bf16.mxu0 0
    %2884 = vmatpush1.bf16.msra.mxu0 %v2832
    %2885 = vmatprep.subr.bf16.mxu0 0
    %2886 = vmatpush1.bf16.msra.mxu0 %v2833
    %2887 = vmatprep.subr.bf16.mxu0 0
    %2888 = vmatpush1.bf16.msra.mxu0 %v2834
    %2889 = vmatprep.subr.bf16.mxu0 0
    %2890 = vmatpush1.bf16.msra.mxu0 %v2857
    %2891 = vmatprep.mubr.bf16.mxu0 %v2853
    %2892 = vmatmul.mubr.bf16.gmra.mrb[0].mxu0 %v2715
    %v2893 = vpop.f32.mrb[0].mxu0
    %v2894 = vadd.f32 %v2754, %v2893
    %v2895 = vpop.f32.mrb[0].mxu0
    %v2896 = vpop.f32.mrb[0].mxu0
    %v2897 = vpop.f32.mrb[0].mxu0
    %2898 = vdwg.mxu0
    %2899 = vmax.xlane.f32.xlu0 %v2894
    %v2900 = vpop.xlane.xlu0 %2899
    %v2901 = vsub.f32 %v2894, %v2900
    %v2902 = vmul.f32 %v2901, 1.442695
    %v2903 = vpow.pop %v2902
    %2904 = vadd.xlane.f32.xlu0 %v2903
    %v2905 = vpop.xlane.xlu0 %2904
    %v2906 = vlog2.pop %v2905
    %v2907 = vmul.f32 %v2906, 0.6931472
    %v2908 = vsub.f32 %v2901, %v2907
    %2909 = vst [vmem:[#allocation2] sm:$0xff] %v2908
    // Predicated region
    $region30: #{fcnet_forward.1} parent=1 // pred_check
      _
    $region31: #{fcnet_forward.1} parent=1 // pred_check_branch
      %2911 = sbr.rel (0) target = $region33
    $region32: #{fcnet_forward.1} parent=1 // pred_region
      %s2913 = ssub.s32 128, 128
      %2914 = vsyncadd [#allocation3], %s2913
      %s2916 = sshll.u32 [#allocation2], 4
      %s2917 = int_to_ptr.vmem [resolvable:$true] %s2916
      %2919 = dma.vmem_to_hbm [thread:$0]  %s2917, 128, %s7, [#allocation3]
    $region33: #{fcnet_forward.1} parent=1 // pred_fallthru
      _
    // Predicated region
    $region34: #{fcnet_forward.1} parent=1 // pred_check
      _
    $region35: #{fcnet_forward.1} parent=1 // pred_check_branch
      %2921 = sbr.rel (0) target = $region37
    $region36: #{fcnet_forward.1} parent=1 // pred_region
      %2922 = dma.done [#allocation3], 128
    $region37: #{fcnet_forward.1} parent=1 // pred_fallthru
      _
    %2923 = vsyncpa [#allocation3], 1

</llo_original>
